<compile_context>
chip_gen: v7x
topology: tpu7x:2x2x1
jax: 0.10.0
libtpu: 0.0.40
codegen_flags: <defaults>
</compile_context>

<pallas_src>
import jax
import jax.numpy as jnp
from jax.experimental import pallas as pl
from jax.experimental.pallas import tpu as pltpu


# ---------------------------------------------------------------- constants ----

P = 256                       # padded lane width for every matrix / activation
_NUM_W = 8                    # number of packed (256,256) weight blocks
_BIAS_ROW0 = _NUM_W * P       # first row of the bias block inside the blob
BLOB_ROWS = _BIAS_ROW0 + 8    # 2056 rows total (8-aligned)
_NEG = -1e30                  # "minus infinity" fill for padded logit columns


# ------------------------------------------------------------------ kernel ----

def _mlp_ws_kernel(d_ref, blob_ref, out_ref):
    """d_ref:   (2*Bp, 256) stacked padded digit slabs  [d1 rows ; d2 rows]
       blob_ref:(2056, 256) packed padded weights/biases (BN folded)
       out_ref: (3*Bp, 256) = [log_softmax(d1) ; log_softmax(d2) ; comparison logits]."""
    f32 = jnp.float32

    def w(i):                                     # i-th padded (256,256) weight block
        return blob_ref[i * P:(i + 1) * P, :]

    def b(i):                                     # i-th padded (1,256) bias row
        r = _BIAS_ROW0 + i
        return blob_ref[r:r + 1, :]

    def linear(x, i_w, i_b):
        return jnp.dot(x, w(i_w), preferred_element_type=f32) + b(i_b)

    # ---- shared tower, run once on the stacked slab (weights are shared) -----
    x = d_ref[...]                                # (2*Bp, 256)
    h = jnp.maximum(linear(x, 0, 0), 0.0)         # Linear+BN+ReLU (+Dropout = id)
    h = jnp.maximum(linear(h, 1, 1), 0.0)
    h = jnp.maximum(linear(h, 2, 2), 0.0)
    logits = linear(h, 3, 3)                      # padded cols carry -1e30 via b4 padding
    m = jnp.max(logits, axis=1, keepdims=True)    # LogSoftmax(dim=1), exact for real 10 cols
    z = logits - m
    lse = jnp.log(jnp.sum(jnp.exp(z), axis=1, keepdims=True))
    o = z - lse                                   # (2*Bp, 256); cols >= 10 junk, sliced off outside

    # ---- comparison head: concat replaced by split-weight matmuls ------------
    bp = x.shape[0] // 2                          # static
    o1 = o[:bp]
    o2 = o[bp:]
    hc = jnp.maximum(jnp.dot(o1, w(4), preferred_element_type=f32)
                     + jnp.dot(o2, w(5), preferred_element_type=f32) + b(4), 0.0)
    hc = jnp.maximum(linear(hc, 6, 5), 0.0)
    oc = linear(hc, 7, 6)                         # (Bp, 256); cols >= 2 are zero

    # ---- single fused, lane-dense output (unmasked 256-lane stores) ----------
    out_ref[0:2 * bp, :] = o
    out_ref[2 * bp:3 * bp, :] = oc


# --------------------------------------------------------------- wrapper ------

def mlp_ws_al_bd_forward(x, blob):
    """x: (B, 2, 14, 14) float32; blob: packed weights. Returns (first, second, result)."""
    B = x.shape[0]
    Bp = ((B + 7) // 8) * 8                       # 8-align the batch for sublane tiling

    d = x.astype(jnp.float32).reshape(B, 2, 14 * 14)
    d1 = jnp.pad(d[:, 0], ((0, Bp - B), (0, P - 196)))   # (Bp, 256)
    d2 = jnp.pad(d[:, 1], ((0, Bp - B), (0, P - 196)))
    stacked = jnp.concatenate([d1, d2], axis=0)          # (2*Bp, 256)

    vmem = pl.BlockSpec(memory_space=pltpu.MemorySpace.VMEM)
    out = pl.pallas_call(
        _mlp_ws_kernel,
        out_shape=jax.ShapeDtypeStruct((3 * Bp, P), jnp.float32),
        in_specs=[vmem, vmem],
        out_specs=vmem,
    )(stacked, blob)

    first = out[:B, :10]
    second = out[Bp:Bp + B, :10]
    result = out[2 * Bp:2 * Bp + B, :2]
    return first, second, result


# ------------------------------------------------------ parameter handling ----

def _fold_bn(w, b, gamma, beta, mean, var, eps=1e-5):
    """Fold an eval-mode BatchNorm1d into the preceding Linear (x @ w + b)."""
    scale = gamma / jnp.sqrt(var + eps)
    return w * scale[None, :], b * scale + (beta - mean * scale)


def make_params(key):
    def linear(key, fan_in, fan_out):
        kw, kb = jax.random.split(key)
        bound = 1.0 / jnp.sqrt(fan_in)
        w = jax.random.uniform(kw, (fan_in, fan_out), jnp.float32, -bound, bound)
        b = jax.random.uniform(kb, (1, fan_out), jnp.float32, -bound, bound)
        return w, b

    def bn(key, n):
        k1, k2, k3, k4 = jax.random.split(key, 4)
        gamma = jax.random.uniform(k1, (n,), jnp.float32, 0.5, 1.5)
        beta = 0.1 * jax.random.normal(k2, (n,), jnp.float32)
        mean = 0.1 * jax.random.normal(k3, (n,), jnp.float32)
        var = jax.random.uniform(k4, (n,), jnp.float32, 0.5, 1.5)
        return gamma, beta, mean, var

    keys = jax.random.split(key, 12)
    p = {}
    # shared tower: Linear(196,100)+BN, Linear(100,100)+BN, Linear(100,100)+BN, Linear(100,10)
    w, b = linear(keys[0], 196, 100); p["w1"], p["b1"] = _fold_bn(w, b, *bn(keys[1], 100))
    w, b = linear(keys[2], 100, 100); p["w2"], p["b2"] = _fold_bn(w, b, *bn(keys[3], 100))
    w, b = linear(keys[4], 100, 100); p["w3"], p["b3"] = _fold_bn(w, b, *bn(keys[5], 100))
    p["w4"], p["b4"] = linear(keys[6], 100, 10)
    # comparison head: Linear(20,200)+BN, Linear(200,200)+BN, Linear(200,2)
    w, b = linear(keys[7], 20, 200);  p["wc1"], p["bc1"] = _fold_bn(w, b, *bn(keys[8], 200))
    w, b = linear(keys[9], 200, 200); p["wc2"], p["bc2"] = _fold_bn(w, b, *bn(keys[10], 200))
    p["wc3"], p["bc3"] = linear(keys[11], 200, 2)
    return p


def pack_params(p):
    """Pad every (BN-folded) matrix/bias to lane width 256 and stack into one f32 blob."""
    def pad_w(w):
        out = jnp.zeros((P, P), jnp.float32)
        return out.at[:w.shape[0], :w.shape[1]].set(w)

    def pad_b(b, fill=0.0):
        b = jnp.asarray(b, jnp.float32).reshape(-1)
        out = jnp.full((P,), fill, jnp.float32)
        return out.at[:b.shape[0]].set(b)

    wc1 = p["wc1"]                                       # (20, 200) -> split for concat-free head
    weight_blocks = [
        pad_w(p["w1"]), pad_w(p["w2"]), pad_w(p["w3"]), pad_w(p["w4"]),
        pad_w(wc1[:10]), pad_w(wc1[10:]),
        pad_w(p["wc2"]), pad_w(p["wc3"]),
    ]
    bias_rows = jnp.stack([
        pad_b(p["b1"]), pad_b(p["b2"]), pad_b(p["b3"]),
        pad_b(p["b4"], fill=_NEG),                       # -1e30 pad => log-softmax ignores pad cols
        pad_b(p["bc1"]), pad_b(p["bc2"]), pad_b(p["bc3"]),
        jnp.zeros((P,), jnp.float32),
    ])
    blob = jnp.concatenate(weight_blocks + [bias_rows], axis=0)   # (2056, 256)
    assert blob.shape == (BLOB_ROWS, P)
    return blob


# --------------------------------------------------------------- reference ----

def reference_forward(x, p):
    B = x.shape[0]
    d1 = x[:, 0].reshape(B, -1)
    d2 = x[:, 1].reshape(B, -1)

    def tower(h):
        h = jax.nn.relu(h @ p["w1"] + p["b1"])
        h = jax.nn.relu(h @ p["w2"] + p["b2"])
        h = jax.nn.relu(h @ p["w3"] + p["b3"])
        return jax.nn.log_softmax(h @ p["w4"] + p["b4"], axis=1)

    o1, o2 = tower(d1), tower(d2)
    h = jnp.concatenate([o1, o2], axis=1)
    h = jax.nn.relu(h @ p["wc1"] + p["bc1"])
    h = jax.nn.relu(h @ p["wc2"] + p["bc2"])
    return o1, o2, h @ p["wc3"] + p["bc3"]


# -------------------------------------------------------------------- main ----

if __name__ == "__main__":
    key = jax.random.PRNGKey(0)
    kx, kp = jax.random.split(key)

    B = 8
    x = jax.random.normal(kx, (B, 2, 14, 14), jnp.float32)   # NCHW, 2 digit channels
    params = make_params(kp)
    blob = pack_params(params)                               # one-time host-side packing

    out = jax.jit(mlp_ws_al_bd_forward)(x, blob)
    out = jax.block_until_ready(out)

    ref = reference_forward(x, params)
    for o, r in zip(out, ref):
        assert o.shape == r.shape
        assert jnp.allclose(o, r, atol=1e-4, rtol=1e-4), float(jnp.abs(o - r).max())

    print("KERNEL_OK")
</pallas_src>

<mosaic_0001>
module attributes {stable_mosaic.version = 11 : i64} {
  func.func @_mlp_ws_kernel(%arg0: memref<16x256xf32, #tpu.memory_space<vmem>>, %arg1: memref<2056x256xf32, #tpu.memory_space<vmem>>, %arg2: memref<24x256xf32, #tpu.memory_space<vmem>>) attributes {dimension_semantics = [], scalar_prefetch = 0 : i64, scratch_operands = 0 : i64, tpu.core_type = #tpu.core_type<tc>} {
    %c0 = arith.constant 0 : index
    %c0_0 = arith.constant 0 : index
    %0 = vector.load %arg0[%c0, %c0_0] : memref<16x256xf32, #tpu.memory_space<vmem>>, vector<16x256xf32>
    %c0_1 = arith.constant 0 : index
    %c0_2 = arith.constant 0 : index
    %1 = vector.load %arg1[%c0_1, %c0_2] : memref<2056x256xf32, #tpu.memory_space<vmem>>, vector<256x256xf32>
    %cst = arith.constant dense<0.000000e+00> : vector<16x256xf32>
    %2 = tpu.matmul %0, %1, %cst {dimension_numbers = #tpu.dot_dimension_numbers<[1], [0], [0], [1], [0, 0, 1, 1], [], []>} : vector<16x256xf32>, vector<256x256xf32>, vector<16x256xf32> -> vector<16x256xf32>
    %c2048 = arith.constant 2048 : index
    %c0_3 = arith.constant 0 : index
    %3 = vector.load %arg1[%c2048, %c0_3] : memref<2056x256xf32, #tpu.memory_space<vmem>>, vector<1x256xf32>
    %4 = vector.broadcast %3 : vector<1x256xf32> to vector<16x256xf32>
    %5 = arith.addf %2, %4 : vector<16x256xf32>
    %cst_4 = arith.constant 0.000000e+00 : f32
    %6 = vector.broadcast %cst_4 : f32 to vector<16x256xf32>
    %7 = arith.maximumf %5, %6 : vector<16x256xf32>
    %c256 = arith.constant 256 : index
    %c0_5 = arith.constant 0 : index
    %8 = vector.load %arg1[%c256, %c0_5] : memref<2056x256xf32, #tpu.memory_space<vmem>>, vector<256x256xf32>
    %cst_6 = arith.constant dense<0.000000e+00> : vector<16x256xf32>
    %9 = tpu.matmul %7, %8, %cst_6 {dimension_numbers = #tpu.dot_dimension_numbers<[1], [0], [0], [1], [0, 0, 1, 1], [], []>} : vector<16x256xf32>, vector<256x256xf32>, vector<16x256xf32> -> vector<16x256xf32>
    %c2049 = arith.constant 2049 : index
    %c0_7 = arith.constant 0 : index
    %10 = vector.load %arg1[%c2049, %c0_7] : memref<2056x256xf32, #tpu.memory_space<vmem>>, vector<1x256xf32>
    %11 = vector.broadcast %10 : vector<1x256xf32> to vector<16x256xf32>
    %12 = arith.addf %9, %11 : vector<16x256xf32>
    %cst_8 = arith.constant 0.000000e+00 : f32
    %13 = vector.broadcast %cst_8 : f32 to vector<16x256xf32>
    %14 = arith.maximumf %12, %13 : vector<16x256xf32>
    %c512 = arith.constant 512 : index
    %c0_9 = arith.constant 0 : index
    %15 = vector.load %arg1[%c512, %c0_9] : memref<2056x256xf32, #tpu.memory_space<vmem>>, vector<256x256xf32>
    %cst_10 = arith.constant dense<0.000000e+00> : vector<16x256xf32>
    %16 = tpu.matmul %14, %15, %cst_10 {dimension_numbers = #tpu.dot_dimension_numbers<[1], [0], [0], [1], [0, 0, 1, 1], [], []>} : vector<16x256xf32>, vector<256x256xf32>, vector<16x256xf32> -> vector<16x256xf32>
    %c2050 = arith.constant 2050 : index
    %c0_11 = arith.constant 0 : index
    %17 = vector.load %arg1[%c2050, %c0_11] : memref<2056x256xf32, #tpu.memory_space<vmem>>, vector<1x256xf32>
    %18 = vector.broadcast %17 : vector<1x256xf32> to vector<16x256xf32>
    %19 = arith.addf %16, %18 : vector<16x256xf32>
    %cst_12 = arith.constant 0.000000e+00 : f32
    %20 = vector.broadcast %cst_12 : f32 to vector<16x256xf32>
    %21 = arith.maximumf %19, %20 : vector<16x256xf32>
    %c768 = arith.constant 768 : index
    %c0_13 = arith.constant 0 : index
    %22 = vector.load %arg1[%c768, %c0_13] : memref<2056x256xf32, #tpu.memory_space<vmem>>, vector<256x256xf32>
    %cst_14 = arith.constant dense<0.000000e+00> : vector<16x256xf32>
    %23 = tpu.matmul %21, %22, %cst_14 {dimension_numbers = #tpu.dot_dimension_numbers<[1], [0], [0], [1], [0, 0, 1, 1], [], []>} : vector<16x256xf32>, vector<256x256xf32>, vector<16x256xf32> -> vector<16x256xf32>
    %c2051 = arith.constant 2051 : index
    %c0_15 = arith.constant 0 : index
    %24 = vector.load %arg1[%c2051, %c0_15] : memref<2056x256xf32, #tpu.memory_space<vmem>>, vector<1x256xf32>
    %25 = vector.broadcast %24 : vector<1x256xf32> to vector<16x256xf32>
    %26 = arith.addf %23, %25 : vector<16x256xf32>
    %cst_16 = arith.constant dense<0xFF800000> : vector<16xf32>
    %27 = vector.multi_reduction <maximumf>, %26, %cst_16 [1] : vector<16x256xf32> to vector<16xf32>
    %28 = vector.shape_cast %27 : vector<16xf32> to vector<16x1xf32>
    %29 = vector.broadcast %28 : vector<16x1xf32> to vector<16x256xf32>
    %30 = arith.subf %26, %29 : vector<16x256xf32>
    %31 = math.exp %30 : vector<16x256xf32>
    %cst_17 = arith.constant dense<0.000000e+00> : vector<16xf32>
    %32 = vector.multi_reduction <add>, %31, %cst_17 [1] : vector<16x256xf32> to vector<16xf32>
    %33 = vector.shape_cast %32 : vector<16xf32> to vector<16x1xf32>
    %34 = math.log %33 : vector<16x1xf32>
    %35 = vector.broadcast %34 : vector<16x1xf32> to vector<16x256xf32>
    %36 = arith.subf %30, %35 : vector<16x256xf32>
    %37 = vector.extract_strided_slice %36 {offsets = [0, 0], sizes = [8, 256], strides = [1, 1]} : vector<16x256xf32> to vector<8x256xf32>
    %38 = vector.extract_strided_slice %36 {offsets = [8, 0], sizes = [8, 256], strides = [1, 1]} : vector<16x256xf32> to vector<8x256xf32>
    %c1024 = arith.constant 1024 : index
    %c0_18 = arith.constant 0 : index
    %39 = vector.load %arg1[%c1024, %c0_18] : memref<2056x256xf32, #tpu.memory_space<vmem>>, vector<256x256xf32>
    %cst_19 = arith.constant dense<0.000000e+00> : vector<8x256xf32>
    %40 = tpu.matmul %37, %39, %cst_19 {dimension_numbers = #tpu.dot_dimension_numbers<[1], [0], [0], [1], [0, 0, 1, 1], [], []>} : vector<8x256xf32>, vector<256x256xf32>, vector<8x256xf32> -> vector<8x256xf32>
    %c1280 = arith.constant 1280 : index
    %c0_20 = arith.constant 0 : index
    %41 = vector.load %arg1[%c1280, %c0_20] : memref<2056x256xf32, #tpu.memory_space<vmem>>, vector<256x256xf32>
    %cst_21 = arith.constant dense<0.000000e+00> : vector<8x256xf32>
    %42 = tpu.matmul %38, %41, %cst_21 {dimension_numbers = #tpu.dot_dimension_numbers<[1], [0], [0], [1], [0, 0, 1, 1], [], []>} : vector<8x256xf32>, vector<256x256xf32>, vector<8x256xf32> -> vector<8x256xf32>
    %43 = arith.addf %40, %42 : vector<8x256xf32>
    %c2052 = arith.constant 2052 : index
    %c0_22 = arith.constant 0 : index
    %44 = vector.load %arg1[%c2052, %c0_22] : memref<2056x256xf32, #tpu.memory_space<vmem>>, vector<1x256xf32>
    %45 = vector.broadcast %44 : vector<1x256xf32> to vector<8x256xf32>
    %46 = arith.addf %43, %45 : vector<8x256xf32>
    %cst_23 = arith.constant 0.000000e+00 : f32
    %47 = vector.broadcast %cst_23 : f32 to vector<8x256xf32>
    %48 = arith.maximumf %46, %47 : vector<8x256xf32>
    %c1536 = arith.constant 1536 : index
    %c0_24 = arith.constant 0 : index
    %49 = vector.load %arg1[%c1536, %c0_24] : memref<2056x256xf32, #tpu.memory_space<vmem>>, vector<256x256xf32>
    %cst_25 = arith.constant dense<0.000000e+00> : vector<8x256xf32>
    %50 = tpu.matmul %48, %49, %cst_25 {dimension_numbers = #tpu.dot_dimension_numbers<[1], [0], [0], [1], [0, 0, 1, 1], [], []>} : vector<8x256xf32>, vector<256x256xf32>, vector<8x256xf32> -> vector<8x256xf32>
    %c2053 = arith.constant 2053 : index
    %c0_26 = arith.constant 0 : index
    %51 = vector.load %arg1[%c2053, %c0_26] : memref<2056x256xf32, #tpu.memory_space<vmem>>, vector<1x256xf32>
    %52 = vector.broadcast %51 : vector<1x256xf32> to vector<8x256xf32>
    %53 = arith.addf %50, %52 : vector<8x256xf32>
    %cst_27 = arith.constant 0.000000e+00 : f32
    %54 = vector.broadcast %cst_27 : f32 to vector<8x256xf32>
    %55 = arith.maximumf %53, %54 : vector<8x256xf32>
    %c1792 = arith.constant 1792 : index
    %c0_28 = arith.constant 0 : index
    %56 = vector.load %arg1[%c1792, %c0_28] : memref<2056x256xf32, #tpu.memory_space<vmem>>, vector<256x256xf32>
    %cst_29 = arith.constant dense<0.000000e+00> : vector<8x256xf32>
    %57 = tpu.matmul %55, %56, %cst_29 {dimension_numbers = #tpu.dot_dimension_numbers<[1], [0], [0], [1], [0, 0, 1, 1], [], []>} : vector<8x256xf32>, vector<256x256xf32>, vector<8x256xf32> -> vector<8x256xf32>
    %c2054 = arith.constant 2054 : index
    %c0_30 = arith.constant 0 : index
    %58 = vector.load %arg1[%c2054, %c0_30] : memref<2056x256xf32, #tpu.memory_space<vmem>>, vector<1x256xf32>
    %59 = vector.broadcast %58 : vector<1x256xf32> to vector<8x256xf32>
    %60 = arith.addf %57, %59 : vector<8x256xf32>
    %c0_31 = arith.constant 0 : index
    %c0_32 = arith.constant 0 : index
    %61 = vector.load %arg2[%c0_31, %c0_32] : memref<24x256xf32, #tpu.memory_space<vmem>>, vector<16x256xf32>
    tpu.vector_store %arg2[%c0_31, %c0_32], %36 {strides = array<i32>} : memref<24x256xf32, #tpu.memory_space<vmem>>, vector<16x256xf32>,
    %c16 = arith.constant 16 : index
    %c0_33 = arith.constant 0 : index
    %62 = vector.load %arg2[%c16, %c0_33] : memref<24x256xf32, #tpu.memory_space<vmem>>, vector<8x256xf32>
    tpu.vector_store %arg2[%c16, %c0_33], %60 {strides = array<i32>} : memref<24x256xf32, #tpu.memory_space<vmem>>, vector<8x256xf32>,
    return
  }
}

</mosaic_0001>

<llo_original>
// kernel: mlp_ws_al_bd_forward.1
$region0: #{mlp_ws_al_bd_forward.1}
  #allocation0 [shape = 'u32[]', space=smem, size = 0x4, offset = 0x4, fixed_abs, tag = 'smem constant byte address 0x4 - core index']
  #allocation1 [shape = 'u32[144,128]{1,0:T(1,128)}', space=vmem, size = 0x12000, scoped, tag = 'internal scratch']
  %s0 = inlined_call_operand.vmem [shape: f32[16,256], index: 0, kind: input, shape index: {}]
  %s1 = inlined_call_operand.hbm [shape: f32[2056,256], index: 1, kind: input, shape index: {}]
  %s2 = inlined_call_operand.vmem [shape: f32[24,256], index: 2, kind: output, shape index: {}]
  %s3 = sld [smem:[#allocation0]]
  $region22: #{mlp_ws_al_bd_forward.1} parent=0
    _
  %s5 = ssub.s32 1, %s3
  %s6 = scalar_select 0, %s5, %s3
  $region1: #{mlp_ws_al_bd_forward.1} parent=0
    #allocation2 [shape = 'u8[2105344]{0}', space=vmem, size = 0x202000, scoped, tag = 'input window, operand 1, single buffered']
    #allocation3 [shape = 's32[1]{0}', space=sflag, size = 0x4, scoped, tag = 'scoped memory for mlp_ws_al_bd_forward.1']
    %7 = vsyncpa [#allocation3], 0
    // Predicated region
    $region2: #{mlp_ws_al_bd_forward.1} parent=1 // pred_check
      _
    $region3: #{mlp_ws_al_bd_forward.1} parent=1 // pred_check_branch
      %9 = sbr.rel (0) target = $region5
    $region4: #{mlp_ws_al_bd_forward.1} parent=1 // pred_region
      _
    $region5: #{mlp_ws_al_bd_forward.1} parent=1 // pred_fallthru
      _
    // Predicated region
    $region6: #{mlp_ws_al_bd_forward.1} parent=1 // pred_check
      _
    $region7: #{mlp_ws_al_bd_forward.1} parent=1 // pred_check_branch
      %11 = sbr.rel (0) target = $region9
    $region8: #{mlp_ws_al_bd_forward.1} parent=1 // pred_region
      %s13 = ssub.s32 65792, 65792
      %14 = vsyncadd [#allocation3], %s13
      %s15 = sshll.u32 [#allocation2], 4
      %s16 = int_to_ptr.vmem [resolvable:$true] %s15
      %21 = dma.hbm_to_vmem [thread:$0]  %s1, 65792, %s16, [#allocation3], 256, 256, 16
    $region9: #{mlp_ws_al_bd_forward.1} parent=1 // pred_fallthru
      _
    // Predicated region
    $region10: #{mlp_ws_al_bd_forward.1} parent=1 // pred_check
      _
    $region11: #{mlp_ws_al_bd_forward.1} parent=1 // pred_check_branch
      %23 = sbr.rel (0) target = $region13
    $region12: #{mlp_ws_al_bd_forward.1} parent=1 // pred_region
      %24 = dma.done [#allocation3], 65792
    $region13: #{mlp_ws_al_bd_forward.1} parent=1 // pred_fallthru
      _
    %v25 = vld [vmem:[%s0] sm:$0xff]
    %v26 = vld [vmem:[%s0 + $0x8] sm:$0xff]
    %v27 = vld [vmem:[%s0 + $0x10] sm:$0xff]
    %v28 = vld [vmem:[%s0 + $0x18] sm:$0xff]
    %v29 = vld [vmem:[#allocation2] sm:$0xff]
    %v30 = vld [vmem:[#allocation2 + $0x8] sm:$0xff]
    %v31 = vld [vmem:[#allocation2 + $0x10] sm:$0xff]
    %v32 = vld [vmem:[#allocation2 + $0x18] sm:$0xff]
    %v33 = vld [vmem:[#allocation2 + $0x20] sm:$0xff]
    %v34 = vld [vmem:[#allocation2 + $0x28] sm:$0xff]
    %v35 = vld [vmem:[#allocation2 + $0x30] sm:$0xff]
    %v36 = vld [vmem:[#allocation2 + $0x38] sm:$0xff]
    %v37 = vld [vmem:[#allocation2 + $0x40] sm:$0xff]
    %v38 = vld [vmem:[#allocation2 + $0x48] sm:$0xff]
    %v39 = vld [vmem:[#allocation2 + $0x50] sm:$0xff]
    %v40 = vld [vmem:[#allocation2 + $0x58] sm:$0xff]
    %v41 = vld [vmem:[#allocation2 + $0x60] sm:$0xff]
    %v42 = vld [vmem:[#allocation2 + $0x68] sm:$0xff]
    %v43 = vld [vmem:[#allocation2 + $0x70] sm:$0xff]
    %v44 = vld [vmem:[#allocation2 + $0x78] sm:$0xff]
    %v45 = vld [vmem:[#allocation2 + $0x80] sm:$0xff]
    %v46 = vld [vmem:[#allocation2 + $0x88] sm:$0xff]
    %v47 = vld [vmem:[#allocation2 + $0x90] sm:$0xff]
    %v48 = vld [vmem:[#allocation2 + $0x98] sm:$0xff]
    %v49 = vld [vmem:[#allocation2 + $0xa0] sm:$0xff]
    %v50 = vld [vmem:[#allocation2 + $0xa8] sm:$0xff]
    %v51 = vld [vmem:[#allocation2 + $0xb0] sm:$0xff]
    %v52 = vld [vmem:[#allocation2 + $0xb8] sm:$0xff]
    %v53 = vld [vmem:[#allocation2 + $0xc0] sm:$0xff]
    %v54 = vld [vmem:[#allocation2 + $0xc8] sm:$0xff]
    %v55 = vld [vmem:[#allocation2 + $0xd0] sm:$0xff]
    %v56 = vld [vmem:[#allocation2 + $0xd8] sm:$0xff]
    %v57 = vld [vmem:[#allocation2 + $0xe0] sm:$0xff]
    %v58 = vld [vmem:[#allocation2 + $0xe8] sm:$0xff]
    %v59 = vld [vmem:[#allocation2 + $0xf0] sm:$0xff]
    %v60 = vld [vmem:[#allocation2 + $0xf8] sm:$0xff]
    %v61 = vld [vmem:[#allocation2 + $0x100] sm:$0xff]
    %v62 = vld [vmem:[#allocation2 + $0x108] sm:$0xff]
    %v63 = vld [vmem:[#allocation2 + $0x110] sm:$0xff]
    %v64 = vld [vmem:[#allocation2 + $0x118] sm:$0xff]
    %v65 = vld [vmem:[#allocation2 + $0x120] sm:$0xff]
    %v66 = vld [vmem:[#allocation2 + $0x128] sm:$0xff]
    %v67 = vld [vmem:[#allocation2 + $0x130] sm:$0xff]
    %v68 = vld [vmem:[#allocation2 + $0x138] sm:$0xff]
    %v69 = vld [vmem:[#allocation2 + $0x140] sm:$0xff]
    %v70 = vld [vmem:[#allocation2 + $0x148] sm:$0xff]
    %v71 = vld [vmem:[#allocation2 + $0x150] sm:$0xff]
    %v72 = vld [vmem:[#allocation2 + $0x158] sm:$0xff]
    %v73 = vld [vmem:[#allocation2 + $0x160] sm:$0xff]
    %v74 = vld [vmem:[#allocation2 + $0x168] sm:$0xff]
    %v75 = vld [vmem:[#allocation2 + $0x170] sm:$0xff]
    %v76 = vld [vmem:[#allocation2 + $0x178] sm:$0xff]
    %v77 = vld [vmem:[#allocation2 + $0x180] sm:$0xff]
    %v78 = vld [vmem:[#allocation2 + $0x188] sm:$0xff]
    %v79 = vld [vmem:[#allocation2 + $0x190] sm:$0xff]
    %v80 = vld [vmem:[#allocation2 + $0x198] sm:$0xff]
    %v81 = vld [vmem:[#allocation2 + $0x1a0] sm:$0xff]
    %v82 = vld [vmem:[#allocation2 + $0x1a8] sm:$0xff]
    %v83 = vld [vmem:[#allocation2 + $0x1b0] sm:$0xff]
    %v84 = vld [vmem:[#allocation2 + $0x1b8] sm:$0xff]
    %v85 = vld [vmem:[#allocation2 + $0x1c0] sm:$0xff]
    %v86 = vld [vmem:[#allocation2 + $0x1c8] sm:$0xff]
    %v87 = vld [vmem:[#allocation2 + $0x1d0] sm:$0xff]
    %v88 = vld [vmem:[#allocation2 + $0x1d8] sm:$0xff]
    %v89 = vld [vmem:[#allocation2 + $0x1e0] sm:$0xff]
    %v90 = vld [vmem:[#allocation2 + $0x1e8] sm:$0xff]
    %v91 = vld [vmem:[#allocation2 + $0x1f0] sm:$0xff]
    %v92 = vld [vmem:[#allocation2 + $0x1f8] sm:$0xff]
    %s93 = scalar_lea.vmem [#allocation2], 4096
    %v94 = vld [vmem:[%s93] ss:$8 sm:$0x3]
    %v96 = vlaneseq
    %v97 = vshrl.u32 %v96, 7
    %v98 = vsub.s32 0, %v97
    %v99 = vrot.slane %v94, %v98
    %v100 = vlaneseq
    %v101 = vshrl.u32 %v100, 7
    %v102 = vsub.s32 1, %v101
    %v103 = vrot.slane %v94, %v102
    %106 = vmatprep.subr.mxu0 %v30
    %107 = vmatpush1.msra.mxu0 %v29
    %108 = vmatprep.subr.mxu0 %v32
    %109 = vmatpush1.msra.mxu0 %v31
    %110 = vmatprep.subr.mxu0 %v34
    %111 = vmatpush1.msra.mxu0 %v33
    %112 = vmatprep.subr.mxu0 %v36
    %113 = vmatpush1.msra.mxu0 %v35
    %114 = vmatprep.subr.mxu0 %v38
    %115 = vmatpush1.msra.mxu0 %v37
    %116 = vmatprep.subr.mxu0 %v40
    %117 = vmatpush1.msra.mxu0 %v39
    %118 = vmatprep.subr.mxu0 %v42
    %119 = vmatpush1.msra.mxu0 %v41
    %120 = vmatprep.subr.mxu0 %v44
    %121 = vmatpush1.msra.mxu0 %v43
    %122 = vmatprep.subr.mxu0 %v46
    %123 = vmatpush1.msra.mxu0 %v45
    %124 = vmatprep.subr.mxu0 %v48
    %125 = vmatpush1.msra.mxu0 %v47
    %126 = vmatprep.subr.mxu0 %v50
    %127 = vmatpush1.msra.mxu0 %v49
    %128 = vmatprep.subr.mxu0 %v52
    %129 = vmatpush1.msra.mxu0 %v51
    %130 = vmatprep.subr.mxu0 %v54
    %131 = vmatpush1.msra.mxu0 %v53
    %132 = vmatprep.subr.mxu0 %v56
    %133 = vmatpush1.msra.mxu0 %v55
    %134 = vmatprep.subr.mxu0 %v58
    %135 = vmatpush1.msra.mxu0 %v57
    %136 = vmatprep.subr.mxu0 %v60
    %137 = vmatpush1.msra.mxu0 %v59
    %138 = vmatprep.subr.mxu0 %v62
    %139 = vmatpush1.msra.mxu0 %v61
    %140 = vmatprep.subr.mxu0 %v64
    %141 = vmatpush1.msra.mxu0 %v63
    %142 = vmatprep.subr.mxu0 %v66
    %143 = vmatpush1.msra.mxu0 %v65
    %144 = vmatprep.subr.mxu0 %v68
    %145 = vmatpush1.msra.mxu0 %v67
    %146 = vmatprep.subr.mxu0 %v70
    %147 = vmatpush1.msra.mxu0 %v69
    %148 = vmatprep.subr.mxu0 %v72
    %149 = vmatpush1.msra.mxu0 %v71
    %150 = vmatprep.subr.mxu0 %v74
    %151 = vmatpush1.msra.mxu0 %v73
    %152 = vmatprep.subr.mxu0 %v76
    %153 = vmatpush1.msra.mxu0 %v75
    %154 = vmatprep.subr.mxu0 %v78
    %155 = vmatpush1.msra.mxu0 %v77
    %156 = vmatprep.subr.mxu0 %v80
    %157 = vmatpush1.msra.mxu0 %v79
    %158 = vmatprep.subr.mxu0 %v82
    %159 = vmatpush1.msra.mxu0 %v81
    %160 = vmatprep.subr.mxu0 %v84
    %161 = vmatpush1.msra.mxu0 %v83
    %162 = vmatprep.subr.mxu0 %v86
    %163 = vmatpush1.msra.mxu0 %v85
    %164 = vmatprep.subr.mxu0 %v88
    %165 = vmatpush1.msra.mxu0 %v87
    %166 = vmatprep.subr.mxu0 %v90
    %167 = vmatpush1.msra.mxu0 %v89
    %168 = vmatprep.subr.mxu0 %v92
    %169 = vmatpush1.msra.mxu0 %v91
    %170 = vmatprep.mubr.f32.mxu0 %v26
    %171 = vmatmul.mubr.f32.gmra.mrb[0].mxu0 %v25
    %v172 = vpop.f32.mrb[0].mxu0
    %v173 = vadd.f32 %v99, %v172
    %v174 = vpop.f32.mrb[0].mxu0
    %v175 = vadd.f32 %v103, %v174
    %176 = vmatprep.mubr.f32.mxu0 %v28
    %177 = vmatmul.mubr.f32.gmra.mrb[0].mxu0 %v27
    %v178 = vpop.f32.mrb[0].mxu0
    %v179 = vadd.f32 %v99, %v178
    %v180 = vpop.f32.mrb[0].mxu0
    %v181 = vadd.f32 %v103, %v180
    %182 = vdwg.mxu0
    %v183 = vmax.f32 %v173, 0.0
    %v184 = vmax.f32 %v175, 0.0
    %v185 = vmax.f32 %v179, 0.0
    %v186 = vmax.f32 %v181, 0.0
    %v187 = vld [vmem:[#allocation2 + $0x200] sm:$0xff]
    %v188 = vld [vmem:[#allocation2 + $0x208] sm:$0xff]
    %v189 = vld [vmem:[#allocation2 + $0x210] sm:$0xff]
    %v190 = vld [vmem:[#allocation2 + $0x218] sm:$0xff]
    %v191 = vld [vmem:[#allocation2 + $0x220] sm:$0xff]
    %v192 = vld [vmem:[#allocation2 + $0x228] sm:$0xff]
    %v193 = vld [vmem:[#allocation2 + $0x230] sm:$0xff]
    %v194 = vld [vmem:[#allocation2 + $0x238] sm:$0xff]
    %v195 = vld [vmem:[#allocation2 + $0x240] sm:$0xff]
    %v196 = vld [vmem:[#allocation2 + $0x248] sm:$0xff]
    %v197 = vld [vmem:[#allocation2 + $0x250] sm:$0xff]
    %v198 = vld [vmem:[#allocation2 + $0x258] sm:$0xff]
    %v199 = vld [vmem:[#allocation2 + $0x260] sm:$0xff]
    %v200 = vld [vmem:[#allocation2 + $0x268] sm:$0xff]
    %v201 = vld [vmem:[#allocation2 + $0x270] sm:$0xff]
    %v202 = vld [vmem:[#allocation2 + $0x278] sm:$0xff]
    %v203 = vld [vmem:[#allocation2 + $0x280] sm:$0xff]
    %v204 = vld [vmem:[#allocation2 + $0x288] sm:$0xff]
    %v205 = vld [vmem:[#allocation2 + $0x290] sm:$0xff]
    %v206 = vld [vmem:[#allocation2 + $0x298] sm:$0xff]
    %v207 = vld [vmem:[#allocation2 + $0x2a0] sm:$0xff]
    %v208 = vld [vmem:[#allocation2 + $0x2a8] sm:$0xff]
    %v209 = vld [vmem:[#allocation2 + $0x2b0] sm:$0xff]
    %v210 = vld [vmem:[#allocation2 + $0x2b8] sm:$0xff]
    %v211 = vld [vmem:[#allocation2 + $0x2c0] sm:$0xff]
    %v212 = vld [vmem:[#allocation2 + $0x2c8] sm:$0xff]
    %v213 = vld [vmem:[#allocation2 + $0x2d0] sm:$0xff]
    %v214 = vld [vmem:[#allocation2 + $0x2d8] sm:$0xff]
    %v215 = vld [vmem:[#allocation2 + $0x2e0] sm:$0xff]
    %v216 = vld [vmem:[#allocation2 + $0x2e8] sm:$0xff]
    %v217 = vld [vmem:[#allocation2 + $0x2f0] sm:$0xff]
    %v218 = vld [vmem:[#allocation2 + $0x2f8] sm:$0xff]
    %v219 = vld [vmem:[#allocation2 + $0x300] sm:$0xff]
    %v220 = vld [vmem:[#allocation2 + $0x308] sm:$0xff]
    %v221 = vld [vmem:[#allocation2 + $0x310] sm:$0xff]
    %v222 = vld [vmem:[#allocation2 + $0x318] sm:$0xff]
    %v223 = vld [vmem:[#allocation2 + $0x320] sm:$0xff]
    %v224 = vld [vmem:[#allocation2 + $0x328] sm:$0xff]
    %v225 = vld [vmem:[#allocation2 + $0x330] sm:$0xff]
    %v226 = vld [vmem:[#allocation2 + $0x338] sm:$0xff]
    %v227 = vld [vmem:[#allocation2 + $0x340] sm:$0xff]
    %v228 = vld [vmem:[#allocation2 + $0x348] sm:$0xff]
    %v229 = vld [vmem:[#allocation2 + $0x350] sm:$0xff]
    %v230 = vld [vmem:[#allocation2 + $0x358] sm:$0xff]
    %v231 = vld [vmem:[#allocation2 + $0x360] sm:$0xff]
    %v232 = vld [vmem:[#allocation2 + $0x368] sm:$0xff]
    %v233 = vld [vmem:[#allocation2 + $0x370] sm:$0xff]
    %v234 = vld [vmem:[#allocation2 + $0x378] sm:$0xff]
    %v235 = vld [vmem:[#allocation2 + $0x380] sm:$0xff]
    %v236 = vld [vmem:[#allocation2 + $0x388] sm:$0xff]
    %v237 = vld [vmem:[#allocation2 + $0x390] sm:$0xff]
    %v238 = vld [vmem:[#allocation2 + $0x398] sm:$0xff]
    %v239 = vld [vmem:[#allocation2 + $0x3a0] sm:$0xff]
    %v240 = vld [vmem:[#allocation2 + $0x3a8] sm:$0xff]
    %v241 = vld [vmem:[#allocation2 + $0x3b0] sm:$0xff]
    %v242 = vld [vmem:[#allocation2 + $0x3b8] sm:$0xff]
    %v243 = vld [vmem:[#allocation2 + $0x3c0] sm:$0xff]
    %v244 = vld [vmem:[#allocation2 + $0x3c8] sm:$0xff]
    %v245 = vld [vmem:[#allocation2 + $0x3d0] sm:$0xff]
    %v246 = vld [vmem:[#allocation2 + $0x3d8] sm:$0xff]
    %v247 = vld [vmem:[#allocation2 + $0x3e0] sm:$0xff]
    %v248 = vld [vmem:[#allocation2 + $0x3e8] sm:$0xff]
    %v249 = vld [vmem:[#allocation2 + $0x3f0] sm:$0xff]
    %v250 = vld [vmem:[#allocation2 + $0x3f8] sm:$0xff]
    %s251 = scalar_lea.vmem [#allocation2], 4097
    %v252 = vld [vmem:[%s251] ss:$8 sm:$0x3]
    %v254 = vlaneseq
    %v255 = vshrl.u32 %v254, 7
    %v256 = vsub.s32 0, %v255
    %v257 = vrot.slane %v252, %v256
    %v258 = vlaneseq
    %v259 = vshrl.u32 %v258, 7
    %v260 = vsub.s32 1, %v259
    %v261 = vrot.slane %v252, %v260
    %264 = vmatprep.subr.mxu0 %v188
    %265 = vmatpush1.msra.mxu0 %v187
    %266 = vmatprep.subr.mxu0 %v190
    %267 = vmatpush1.msra.mxu0 %v189
    %268 = vmatprep.subr.mxu0 %v192
    %269 = vmatpush1.msra.mxu0 %v191
    %270 = vmatprep.subr.mxu0 %v194
    %271 = vmatpush1.msra.mxu0 %v193
    %272 = vmatprep.subr.mxu0 %v196
    %273 = vmatpush1.msra.mxu0 %v195
    %274 = vmatprep.subr.mxu0 %v198
    %275 = vmatpush1.msra.mxu0 %v197
    %276 = vmatprep.subr.mxu0 %v200
    %277 = vmatpush1.msra.mxu0 %v199
    %278 = vmatprep.subr.mxu0 %v202
    %279 = vmatpush1.msra.mxu0 %v201
    %280 = vmatprep.subr.mxu0 %v204
    %281 = vmatpush1.msra.mxu0 %v203
    %282 = vmatprep.subr.mxu0 %v206
    %283 = vmatpush1.msra.mxu0 %v205
    %284 = vmatprep.subr.mxu0 %v208
    %285 = vmatpush1.msra.mxu0 %v207
    %286 = vmatprep.subr.mxu0 %v210
    %287 = vmatpush1.msra.mxu0 %v209
    %288 = vmatprep.subr.mxu0 %v212
    %289 = vmatpush1.msra.mxu0 %v211
    %290 = vmatprep.subr.mxu0 %v214
    %291 = vmatpush1.msra.mxu0 %v213
    %292 = vmatprep.subr.mxu0 %v216
    %293 = vmatpush1.msra.mxu0 %v215
    %294 = vmatprep.subr.mxu0 %v218
    %295 = vmatpush1.msra.mxu0 %v217
    %296 = vmatprep.subr.mxu0 %v220
    %297 = vmatpush1.msra.mxu0 %v219
    %298 = vmatprep.subr.mxu0 %v222
    %299 = vmatpush1.msra.mxu0 %v221
    %300 = vmatprep.subr.mxu0 %v224
    %301 = vmatpush1.msra.mxu0 %v223
    %302 = vmatprep.subr.mxu0 %v226
    %303 = vmatpush1.msra.mxu0 %v225
    %304 = vmatprep.subr.mxu0 %v228
    %305 = vmatpush1.msra.mxu0 %v227
    %306 = vmatprep.subr.mxu0 %v230
    %307 = vmatpush1.msra.mxu0 %v229
    %308 = vmatprep.subr.mxu0 %v232
    %309 = vmatpush1.msra.mxu0 %v231
    %310 = vmatprep.subr.mxu0 %v234
    %311 = vmatpush1.msra.mxu0 %v233
    %312 = vmatprep.subr.mxu0 %v236
    %313 = vmatpush1.msra.mxu0 %v235
    %314 = vmatprep.subr.mxu0 %v238
    %315 = vmatpush1.msra.mxu0 %v237
    %316 = vmatprep.subr.mxu0 %v240
    %317 = vmatpush1.msra.mxu0 %v239
    %318 = vmatprep.subr.mxu0 %v242
    %319 = vmatpush1.msra.mxu0 %v241
    %320 = vmatprep.subr.mxu0 %v244
    %321 = vmatpush1.msra.mxu0 %v243
    %322 = vmatprep.subr.mxu0 %v246
    %323 = vmatpush1.msra.mxu0 %v245
    %324 = vmatprep.subr.mxu0 %v248
    %325 = vmatpush1.msra.mxu0 %v247
    %326 = vmatprep.subr.mxu0 %v250
    %327 = vmatpush1.msra.mxu0 %v249
    %328 = vmatprep.mubr.f32.mxu0 %v184
    %329 = vmatmul.mubr.f32.gmra.mrb[0].mxu0 %v183
    %v330 = vpop.f32.mrb[0].mxu0
    %v331 = vadd.f32 %v257, %v330
    %v332 = vpop.f32.mrb[0].mxu0
    %v333 = vadd.f32 %v261, %v332
    %334 = vmatprep.mubr.f32.mxu0 %v186
    %335 = vmatmul.mubr.f32.gmra.mrb[0].mxu0 %v185
    %v336 = vpop.f32.mrb[0].mxu0
    %v337 = vadd.f32 %v257, %v336
    %v338 = vpop.f32.mrb[0].mxu0
    %v339 = vadd.f32 %v261, %v338
    %340 = vdwg.mxu0
    %v341 = vmax.f32 %v331, 0.0
    %v342 = vmax.f32 %v333, 0.0
    %v343 = vmax.f32 %v337, 0.0
    %v344 = vmax.f32 %v339, 0.0
    %v345 = vld [vmem:[#allocation2 + $0x400] sm:$0xff]
    %v346 = vld [vmem:[#allocation2 + $0x408] sm:$0xff]
    %v347 = vld [vmem:[#allocation2 + $0x410] sm:$0xff]
    %v348 = vld [vmem:[#allocation2 + $0x418] sm:$0xff]
    %v349 = vld [vmem:[#allocation2 + $0x420] sm:$0xff]
    %v350 = vld [vmem:[#allocation2 + $0x428] sm:$0xff]
    %v351 = vld [vmem:[#allocation2 + $0x430] sm:$0xff]
    %v352 = vld [vmem:[#allocation2 + $0x438] sm:$0xff]
    %v353 = vld [vmem:[#allocation2 + $0x440] sm:$0xff]
    %v354 = vld [vmem:[#allocation2 + $0x448] sm:$0xff]
    %v355 = vld [vmem:[#allocation2 + $0x450] sm:$0xff]
    %v356 = vld [vmem:[#allocation2 + $0x458] sm:$0xff]
    %v357 = vld [vmem:[#allocation2 + $0x460] sm:$0xff]
    %v358 = vld [vmem:[#allocation2 + $0x468] sm:$0xff]
    %v359 = vld [vmem:[#allocation2 + $0x470] sm:$0xff]
    %v360 = vld [vmem:[#allocation2 + $0x478] sm:$0xff]
    %v361 = vld [vmem:[#allocation2 + $0x480] sm:$0xff]
    %v362 = vld [vmem:[#allocation2 + $0x488] sm:$0xff]
    %v363 = vld [vmem:[#allocation2 + $0x490] sm:$0xff]
    %v364 = vld [vmem:[#allocation2 + $0x498] sm:$0xff]
    %v365 = vld [vmem:[#allocation2 + $0x4a0] sm:$0xff]
    %v366 = vld [vmem:[#allocation2 + $0x4a8] sm:$0xff]
    %v367 = vld [vmem:[#allocation2 + $0x4b0] sm:$0xff]
    %v368 = vld [vmem:[#allocation2 + $0x4b8] sm:$0xff]
    %v369 = vld [vmem:[#allocation2 + $0x4c0] sm:$0xff]
    %v370 = vld [vmem:[#allocation2 + $0x4c8] sm:$0xff]
    %v371 = vld [vmem:[#allocation2 + $0x4d0] sm:$0xff]
    %v372 = vld [vmem:[#allocation2 + $0x4d8] sm:$0xff]
    %v373 = vld [vmem:[#allocation2 + $0x4e0] sm:$0xff]
    %v374 = vld [vmem:[#allocation2 + $0x4e8] sm:$0xff]
    %v375 = vld [vmem:[#allocation2 + $0x4f0] sm:$0xff]
    %v376 = vld [vmem:[#allocation2 + $0x4f8] sm:$0xff]
    %v377 = vld [vmem:[#allocation2 + $0x500] sm:$0xff]
    %v378 = vld [vmem:[#allocation2 + $0x508] sm:$0xff]
    %v379 = vld [vmem:[#allocation2 + $0x510] sm:$0xff]
    %v380 = vld [vmem:[#allocation2 + $0x518] sm:$0xff]
    %v381 = vld [vmem:[#allocation2 + $0x520] sm:$0xff]
    %v382 = vld [vmem:[#allocation2 + $0x528] sm:$0xff]
    %v383 = vld [vmem:[#allocation2 + $0x530] sm:$0xff]
    %v384 = vld [vmem:[#allocation2 + $0x538] sm:$0xff]
    %v385 = vld [vmem:[#allocation2 + $0x540] sm:$0xff]
    %v386 = vld [vmem:[#allocation2 + $0x548] sm:$0xff]
    %v387 = vld [vmem:[#allocation2 + $0x550] sm:$0xff]
    %v388 = vld [vmem:[#allocation2 + $0x558] sm:$0xff]
    %v389 = vld [vmem:[#allocation2 + $0x560] sm:$0xff]
    %v390 = vld [vmem:[#allocation2 + $0x568] sm:$0xff]
    %v391 = vld [vmem:[#allocation2 + $0x570] sm:$0xff]
    %v392 = vld [vmem:[#allocation2 + $0x578] sm:$0xff]
    %v393 = vld [vmem:[#allocation2 + $0x580] sm:$0xff]
    %v394 = vld [vmem:[#allocation2 + $0x588] sm:$0xff]
    %v395 = vld [vmem:[#allocation2 + $0x590] sm:$0xff]
    %v396 = vld [vmem:[#allocation2 + $0x598] sm:$0xff]
    %v397 = vld [vmem:[#allocation2 + $0x5a0] sm:$0xff]
    %v398 = vld [vmem:[#allocation2 + $0x5a8] sm:$0xff]
    %v399 = vld [vmem:[#allocation2 + $0x5b0] sm:$0xff]
    %v400 = vld [vmem:[#allocation2 + $0x5b8] sm:$0xff]
    %v401 = vld [vmem:[#allocation2 + $0x5c0] sm:$0xff]
    %v402 = vld [vmem:[#allocation2 + $0x5c8] sm:$0xff]
    %v403 = vld [vmem:[#allocation2 + $0x5d0] sm:$0xff]
    %v404 = vld [vmem:[#allocation2 + $0x5d8] sm:$0xff]
    %v405 = vld [vmem:[#allocation2 + $0x5e0] sm:$0xff]
    %v406 = vld [vmem:[#allocation2 + $0x5e8] sm:$0xff]
    %v407 = vld [vmem:[#allocation2 + $0x5f0] sm:$0xff]
    %v408 = vld [vmem:[#allocation2 + $0x5f8] sm:$0xff]
    %s409 = scalar_lea.vmem [#allocation2], 4098
    %v410 = vld [vmem:[%s409] ss:$8 sm:$0x3]
    %v412 = vlaneseq
    %v413 = vshrl.u32 %v412, 7
    %v414 = vsub.s32 0, %v413
    %v415 = vrot.slane %v410, %v414
    %v416 = vlaneseq
    %v417 = vshrl.u32 %v416, 7
    %v418 = vsub.s32 1, %v417
    %v419 = vrot.slane %v410, %v418
    %422 = vmatprep.subr.mxu0 %v346
    %423 = vmatpush1.msra.mxu0 %v345
    %424 = vmatprep.subr.mxu0 %v348
    %425 = vmatpush1.msra.mxu0 %v347
    %426 = vmatprep.subr.mxu0 %v350
    %427 = vmatpush1.msra.mxu0 %v349
    %428 = vmatprep.subr.mxu0 %v352
    %429 = vmatpush1.msra.mxu0 %v351
    %430 = vmatprep.subr.mxu0 %v354
    %431 = vmatpush1.msra.mxu0 %v353
    %432 = vmatprep.subr.mxu0 %v356
    %433 = vmatpush1.msra.mxu0 %v355
    %434 = vmatprep.subr.mxu0 %v358
    %435 = vmatpush1.msra.mxu0 %v357
    %436 = vmatprep.subr.mxu0 %v360
    %437 = vmatpush1.msra.mxu0 %v359
    %438 = vmatprep.subr.mxu0 %v362
    %439 = vmatpush1.msra.mxu0 %v361
    %440 = vmatprep.subr.mxu0 %v364
    %441 = vmatpush1.msra.mxu0 %v363
    %442 = vmatprep.subr.mxu0 %v366
    %443 = vmatpush1.msra.mxu0 %v365
    %444 = vmatprep.subr.mxu0 %v368
    %445 = vmatpush1.msra.mxu0 %v367
    %446 = vmatprep.subr.mxu0 %v370
    %447 = vmatpush1.msra.mxu0 %v369
    %448 = vmatprep.subr.mxu0 %v372
    %449 = vmatpush1.msra.mxu0 %v371
    %450 = vmatprep.subr.mxu0 %v374
    %451 = vmatpush1.msra.mxu0 %v373
    %452 = vmatprep.subr.mxu0 %v376
    %453 = vmatpush1.msra.mxu0 %v375
    %454 = vmatprep.subr.mxu0 %v378
    %455 = vmatpush1.msra.mxu0 %v377
    %456 = vmatprep.subr.mxu0 %v380
    %457 = vmatpush1.msra.mxu0 %v379
    %458 = vmatprep.subr.mxu0 %v382
    %459 = vmatpush1.msra.mxu0 %v381
    %460 = vmatprep.subr.mxu0 %v384
    %461 = vmatpush1.msra.mxu0 %v383
    %462 = vmatprep.subr.mxu0 %v386
    %463 = vmatpush1.msra.mxu0 %v385
    %464 = vmatprep.subr.mxu0 %v388
    %465 = vmatpush1.msra.mxu0 %v387
    %466 = vmatprep.subr.mxu0 %v390
    %467 = vmatpush1.msra.mxu0 %v389
    %468 = vmatprep.subr.mxu0 %v392
    %469 = vmatpush1.msra.mxu0 %v391
    %470 = vmatprep.subr.mxu0 %v394
    %471 = vmatpush1.msra.mxu0 %v393
    %472 = vmatprep.subr.mxu0 %v396
    %473 = vmatpush1.msra.mxu0 %v395
    %474 = vmatprep.subr.mxu0 %v398
    %475 = vmatpush1.msra.mxu0 %v397
    %476 = vmatprep.subr.mxu0 %v400
    %477 = vmatpush1.msra.mxu0 %v399
    %478 = vmatprep.subr.mxu0 %v402
    %479 = vmatpush1.msra.mxu0 %v401
    %480 = vmatprep.subr.mxu0 %v404
    %481 = vmatpush1.msra.mxu0 %v403
    %482 = vmatprep.subr.mxu0 %v406
    %483 = vmatpush1.msra.mxu0 %v405
    %484 = vmatprep.subr.mxu0 %v408
    %485 = vmatpush1.msra.mxu0 %v407
    %486 = vmatprep.mubr.f32.mxu0 %v342
    %487 = vmatmul.mubr.f32.gmra.mrb[0].mxu0 %v341
    %v488 = vpop.f32.mrb[0].mxu0
    %v489 = vadd.f32 %v415, %v488
    %v490 = vpop.f32.mrb[0].mxu0
    %v491 = vadd.f32 %v419, %v490
    %492 = vmatprep.mubr.f32.mxu0 %v344
    %493 = vmatmul.mubr.f32.gmra.mrb[0].mxu0 %v343
    %v494 = vpop.f32.mrb[0].mxu0
    %v495 = vadd.f32 %v415, %v494
    %v496 = vpop.f32.mrb[0].mxu0
    %v497 = vadd.f32 %v419, %v496
    %498 = vdwg.mxu0
    %v499 = vmax.f32 %v489, 0.0
    %v500 = vmax.f32 %v491, 0.0
    %v501 = vmax.f32 %v495, 0.0
    %v502 = vmax.f32 %v497, 0.0
    %v503 = vld [vmem:[#allocation2 + $0x600] sm:$0xff]
    %v504 = vld [vmem:[#allocation2 + $0x608] sm:$0xff]
    %v505 = vld [vmem:[#allocation2 + $0x610] sm:$0xff]
    %v506 = vld [vmem:[#allocation2 + $0x618] sm:$0xff]
    %v507 = vld [vmem:[#allocation2 + $0x620] sm:$0xff]
    %v508 = vld [vmem:[#allocation2 + $0x628] sm:$0xff]
    %v509 = vld [vmem:[#allocation2 + $0x630] sm:$0xff]
    %v510 = vld [vmem:[#allocation2 + $0x638] sm:$0xff]
    %v511 = vld [vmem:[#allocation2 + $0x640] sm:$0xff]
    %v512 = vld [vmem:[#allocation2 + $0x648] sm:$0xff]
    %v513 = vld [vmem:[#allocation2 + $0x650] sm:$0xff]
    %v514 = vld [vmem:[#allocation2 + $0x658] sm:$0xff]
    %v515 = vld [vmem:[#allocation2 + $0x660] sm:$0xff]
    %v516 = vld [vmem:[#allocation2 + $0x668] sm:$0xff]
    %v517 = vld [vmem:[#allocation2 + $0x670] sm:$0xff]
    %v518 = vld [vmem:[#allocation2 + $0x678] sm:$0xff]
    %v519 = vld [vmem:[#allocation2 + $0x680] sm:$0xff]
    %v520 = vld [vmem:[#allocation2 + $0x688] sm:$0xff]
    %v521 = vld [vmem:[#allocation2 + $0x690] sm:$0xff]
    %v522 = vld [vmem:[#allocation2 + $0x698] sm:$0xff]
    %v523 = vld [vmem:[#allocation2 + $0x6a0] sm:$0xff]
    %v524 = vld [vmem:[#allocation2 + $0x6a8] sm:$0xff]
    %v525 = vld [vmem:[#allocation2 + $0x6b0] sm:$0xff]
    %v526 = vld [vmem:[#allocation2 + $0x6b8] sm:$0xff]
    %v527 = vld [vmem:[#allocation2 + $0x6c0] sm:$0xff]
    %v528 = vld [vmem:[#allocation2 + $0x6c8] sm:$0xff]
    %v529 = vld [vmem:[#allocation2 + $0x6d0] sm:$0xff]
    %v530 = vld [vmem:[#allocation2 + $0x6d8] sm:$0xff]
    %v531 = vld [vmem:[#allocation2 + $0x6e0] sm:$0xff]
    %v532 = vld [vmem:[#allocation2 + $0x6e8] sm:$0xff]
    %v533 = vld [vmem:[#allocation2 + $0x6f0] sm:$0xff]
    %v534 = vld [vmem:[#allocation2 + $0x6f8] sm:$0xff]
    %v535 = vld [vmem:[#allocation2 + $0x700] sm:$0xff]
    %v536 = vld [vmem:[#allocation2 + $0x708] sm:$0xff]
    %v537 = vld [vmem:[#allocation2 + $0x710] sm:$0xff]
    %v538 = vld [vmem:[#allocation2 + $0x718] sm:$0xff]
    %v539 = vld [vmem:[#allocation2 + $0x720] sm:$0xff]
    %v540 = vld [vmem:[#allocation2 + $0x728] sm:$0xff]
    %v541 = vld [vmem:[#allocation2 + $0x730] sm:$0xff]
    %v542 = vld [vmem:[#allocation2 + $0x738] sm:$0xff]
    %v543 = vld [vmem:[#allocation2 + $0x740] sm:$0xff]
    %v544 = vld [vmem:[#allocation2 + $0x748] sm:$0xff]
    %v545 = vld [vmem:[#allocation2 + $0x750] sm:$0xff]
    %v546 = vld [vmem:[#allocation2 + $0x758] sm:$0xff]
    %v547 = vld [vmem:[#allocation2 + $0x760] sm:$0xff]
    %v548 = vld [vmem:[#allocation2 + $0x768] sm:$0xff]
    %v549 = vld [vmem:[#allocation2 + $0x770] sm:$0xff]
    %v550 = vld [vmem:[#allocation2 + $0x778] sm:$0xff]
    %v551 = vld [vmem:[#allocation2 + $0x780] sm:$0xff]
    %v552 = vld [vmem:[#allocation2 + $0x788] sm:$0xff]
    %v553 = vld [vmem:[#allocation2 + $0x790] sm:$0xff]
    %v554 = vld [vmem:[#allocation2 + $0x798] sm:$0xff]
    %v555 = vld [vmem:[#allocation2 + $0x7a0] sm:$0xff]
    %v556 = vld [vmem:[#allocation2 + $0x7a8] sm:$0xff]
    %v557 = vld [vmem:[#allocation2 + $0x7b0] sm:$0xff]
    %v558 = vld [vmem:[#allocation2 + $0x7b8] sm:$0xff]
    %v559 = vld [vmem:[#allocation2 + $0x7c0] sm:$0xff]
    %v560 = vld [vmem:[#allocation2 + $0x7c8] sm:$0xff]
    %v561 = vld [vmem:[#allocation2 + $0x7d0] sm:$0xff]
    %v562 = vld [vmem:[#allocation2 + $0x7d8] sm:$0xff]
    %v563 = vld [vmem:[#allocation2 + $0x7e0] sm:$0xff]
    %v564 = vld [vmem:[#allocation2 + $0x7e8] sm:$0xff]
    %v565 = vld [vmem:[#allocation2 + $0x7f0] sm:$0xff]
    %v566 = vld [vmem:[#allocation2 + $0x7f8] sm:$0xff]
    %s567 = scalar_lea.vmem [#allocation2], 4099
    %v568 = vld [vmem:[%s567] ss:$8 sm:$0x3]
    %v570 = vlaneseq
    %v571 = vshrl.u32 %v570, 7
    %v572 = vsub.s32 0, %v571
    %v573 = vrot.slane %v568, %v572
    %v574 = vlaneseq
    %v575 = vshrl.u32 %v574, 7
    %v576 = vsub.s32 1, %v575
    %v577 = vrot.slane %v568, %v576
    %580 = vmatprep.subr.mxu0 %v504
    %581 = vmatpush1.msra.mxu0 %v503
    %582 = vmatprep.subr.mxu0 %v506
    %583 = vmatpush1.msra.mxu0 %v505
    %584 = vmatprep.subr.mxu0 %v508
    %585 = vmatpush1.msra.mxu0 %v507
    %586 = vmatprep.subr.mxu0 %v510
    %587 = vmatpush1.msra.mxu0 %v509
    %588 = vmatprep.subr.mxu0 %v512
    %589 = vmatpush1.msra.mxu0 %v511
    %590 = vmatprep.subr.mxu0 %v514
    %591 = vmatpush1.msra.mxu0 %v513
    %592 = vmatprep.subr.mxu0 %v516
    %593 = vmatpush1.msra.mxu0 %v515
    %594 = vmatprep.subr.mxu0 %v518
    %595 = vmatpush1.msra.mxu0 %v517
    %596 = vmatprep.subr.mxu0 %v520
    %597 = vmatpush1.msra.mxu0 %v519
    %598 = vmatprep.subr.mxu0 %v522
    %599 = vmatpush1.msra.mxu0 %v521
    %600 = vmatprep.subr.mxu0 %v524
    %601 = vmatpush1.msra.mxu0 %v523
    %602 = vmatprep.subr.mxu0 %v526
    %603 = vmatpush1.msra.mxu0 %v525
    %604 = vmatprep.subr.mxu0 %v528
    %605 = vmatpush1.msra.mxu0 %v527
    %606 = vmatprep.subr.mxu0 %v530
    %607 = vmatpush1.msra.mxu0 %v529
    %608 = vmatprep.subr.mxu0 %v532
    %609 = vmatpush1.msra.mxu0 %v531
    %610 = vmatprep.subr.mxu0 %v534
    %611 = vmatpush1.msra.mxu0 %v533
    %612 = vmatprep.subr.mxu0 %v536
    %613 = vmatpush1.msra.mxu0 %v535
    %614 = vmatprep.subr.mxu0 %v538
    %615 = vmatpush1.msra.mxu0 %v537
    %616 = vmatprep.subr.mxu0 %v540
    %617 = vmatpush1.msra.mxu0 %v539
    %618 = vmatprep.subr.mxu0 %v542
    %619 = vmatpush1.msra.mxu0 %v541
    %620 = vmatprep.subr.mxu0 %v544
    %621 = vmatpush1.msra.mxu0 %v543
    %622 = vmatprep.subr.mxu0 %v546
    %623 = vmatpush1.msra.mxu0 %v545
    %624 = vmatprep.subr.mxu0 %v548
    %625 = vmatpush1.msra.mxu0 %v547
    %626 = vmatprep.subr.mxu0 %v550
    %627 = vmatpush1.msra.mxu0 %v549
    %628 = vmatprep.subr.mxu0 %v552
    %629 = vmatpush1.msra.mxu0 %v551
    %630 = vmatprep.subr.mxu0 %v554
    %631 = vmatpush1.msra.mxu0 %v553
    %632 = vmatprep.subr.mxu0 %v556
    %633 = vmatpush1.msra.mxu0 %v555
    %634 = vmatprep.subr.mxu0 %v558
    %635 = vmatpush1.msra.mxu0 %v557
    %636 = vmatprep.subr.mxu0 %v560
    %637 = vmatpush1.msra.mxu0 %v559
    %638 = vmatprep.subr.mxu0 %v562
    %639 = vmatpush1.msra.mxu0 %v561
    %640 = vmatprep.subr.mxu0 %v564
    %641 = vmatpush1.msra.mxu0 %v563
    %642 = vmatprep.subr.mxu0 %v566
    %643 = vmatpush1.msra.mxu0 %v565
    %644 = vmatprep.mubr.f32.mxu0 %v500
    %645 = vmatmul.mubr.f32.gmra.mrb[0].mxu0 %v499
    %v646 = vpop.f32.mrb[0].mxu0
    %v647 = vadd.f32 %v573, %v646
    %v648 = vpop.f32.mrb[0].mxu0
    %v649 = vadd.f32 %v577, %v648
    %650 = vmatprep.mubr.f32.mxu0 %v502
    %651 = vmatmul.mubr.f32.gmra.mrb[0].mxu0 %v501
    %v652 = vpop.f32.mrb[0].mxu0
    %v653 = vadd.f32 %v573, %v652
    %v654 = vpop.f32.mrb[0].mxu0
    %v655 = vadd.f32 %v577, %v654
    %656 = vdwg.mxu0
    %v657 = vmax.f32 %v647, %v649
    %658 = vmax.xlane.f32.xlu0 %v657
    %v659 = vpop.xlane.xlu0 %658
    %v660 = vmax.f32 %v653, %v655
    %661 = vmax.xlane.f32.xlu0 %v660
    %v662 = vpop.xlane.xlu0 %661
    %v663 = vsub.f32 %v647, %v659
    %v664 = vsub.f32 %v649, %v659
    %v665 = vsub.f32 %v653, %v662
    %v666 = vsub.f32 %v655, %v662
    %v667 = vmul.f32 %v663, 1.442695
    %v668 = vpow.pop %v667
    %v669 = vmul.f32 %v664, 1.442695
    %v670 = vpow.pop %v669
    %v671 = vmul.f32 %v665, 1.442695
    %v672 = vpow.pop %v671
    %v673 = vmul.f32 %v666, 1.442695
    %v674 = vpow.pop %v673
    %v675 = vadd.f32 %v668, %v670
    %676 = vadd.xlane.f32.xlu0 %v675
    %v677 = vpop.xlane.xlu0 %676
    %v678 = vadd.f32 %v672, %v674
    %679 = vadd.xlane.f32.xlu0 %v678
    %v680 = vpop.xlane.xlu0 %679
    %v681 = vlog2.pop %v677
    %v682 = vmul.f32 %v681, 0.6931472
    %v683 = vlog2.pop %v680
    %v684 = vmul.f32 %v683, 0.6931472
    %v685 = vsub.f32 %v663, %v682
    %v686 = vsub.f32 %v664, %v682
    %v687 = vsub.f32 %v665, %v684
    %v688 = vsub.f32 %v666, %v684
    %v689 = vld [vmem:[#allocation2 + $0x800] sm:$0xff]
    %v690 = vld [vmem:[#allocation2 + $0x808] sm:$0xff]
    %v691 = vld [vmem:[#allocation2 + $0x810] sm:$0xff]
    %v692 = vld [vmem:[#allocation2 + $0x818] sm:$0xff]
    %v693 = vld [vmem:[#allocation2 + $0x820] sm:$0xff]
    %v694 = vld [vmem:[#allocation2 + $0x828] sm:$0xff]
    %v695 = vld [vmem:[#allocation2 + $0x830] sm:$0xff]
    %v696 = vld [vmem:[#allocation2 + $0x838] sm:$0xff]
    %v697 = vld [vmem:[#allocation2 + $0x840] sm:$0xff]
    %v698 = vld [vmem:[#allocation2 + $0x848] sm:$0xff]
    %v699 = vld [vmem:[#allocation2 + $0x850] sm:$0xff]
    %v700 = vld [vmem:[#allocation2 + $0x858] sm:$0xff]
    %v701 = vld [vmem:[#allocation2 + $0x860] sm:$0xff]
    %v702 = vld [vmem:[#allocation2 + $0x868] sm:$0xff]
    %v703 = vld [vmem:[#allocation2 + $0x870] sm:$0xff]
    %v704 = vld [vmem:[#allocation2 + $0x878] sm:$0xff]
    %v705 = vld [vmem:[#allocation2 + $0x880] sm:$0xff]
    %v706 = vld [vmem:[#allocation2 + $0x888] sm:$0xff]
    %v707 = vld [vmem:[#allocation2 + $0x890] sm:$0xff]
    %v708 = vld [vmem:[#allocation2 + $0x898] sm:$0xff]
    %v709 = vld [vmem:[#allocation2 + $0x8a0] sm:$0xff]
    %v710 = vld [vmem:[#allocation2 + $0x8a8] sm:$0xff]
    %v711 = vld [vmem:[#allocation2 + $0x8b0] sm:$0xff]
    %v712 = vld [vmem:[#allocation2 + $0x8b8] sm:$0xff]
    %v713 = vld [vmem:[#allocation2 + $0x8c0] sm:$0xff]
    %v714 = vld [vmem:[#allocation2 + $0x8c8] sm:$0xff]
    %v715 = vld [vmem:[#allocation2 + $0x8d0] sm:$0xff]
    %v716 = vld [vmem:[#allocation2 + $0x8d8] sm:$0xff]
    %v717 = vld [vmem:[#allocation2 + $0x8e0] sm:$0xff]
    %v718 = vld [vmem:[#allocation2 + $0x8e8] sm:$0xff]
    %v719 = vld [vmem:[#allocation2 + $0x8f0] sm:$0xff]
    %v720 = vld [vmem:[#allocation2 + $0x8f8] sm:$0xff]
    %v721 = vld [vmem:[#allocation2 + $0x900] sm:$0xff]
    %v722 = vld [vmem:[#allocation2 + $0x908] sm:$0xff]
    %v723 = vld [vmem:[#allocation2 + $0x910] sm:$0xff]
    %v724 = vld [vmem:[#allocation2 + $0x918] sm:$0xff]
    %v725 = vld [vmem:[#allocation2 + $0x920] sm:$0xff]
    %v726 = vld [vmem:[#allocation2 + $0x928] sm:$0xff]
    %v727 = vld [vmem:[#allocation2 + $0x930] sm:$0xff]
    %v728 = vld [vmem:[#allocation2 + $0x938] sm:$0xff]
    %v729 = vld [vmem:[#allocation2 + $0x940] sm:$0xff]
    %v730 = vld [vmem:[#allocation2 + $0x948] sm:$0xff]
    %v731 = vld [vmem:[#allocation2 + $0x950] sm:$0xff]
    %v732 = vld [vmem:[#allocation2 + $0x958] sm:$0xff]
    %v733 = vld [vmem:[#allocation2 + $0x960] sm:$0xff]
    %v734 = vld [vmem:[#allocation2 + $0x968] sm:$0xff]
    %v735 = vld [vmem:[#allocation2 + $0x970] sm:$0xff]
    %v736 = vld [vmem:[#allocation2 + $0x978] sm:$0xff]
    %v737 = vld [vmem:[#allocation2 + $0x980] sm:$0xff]
    %v738 = vld [vmem:[#allocation2 + $0x988] sm:$0xff]
    %v739 = vld [vmem:[#allocation2 + $0x990] sm:$0xff]
    %v740 = vld [vmem:[#allocation2 + $0x998] sm:$0xff]
    %v741 = vld [vmem:[#allocation2 + $0x9a0] sm:$0xff]
    %v742 = vld [vmem:[#allocation2 + $0x9a8] sm:$0xff]
    %v743 = vld [vmem:[#allocation2 + $0x9b0] sm:$0xff]
    %v744 = vld [vmem:[#allocation2 + $0x9b8] sm:$0xff]
    %v745 = vld [vmem:[#allocation2 + $0x9c0] sm:$0xff]
    %v746 = vld [vmem:[#allocation2 + $0x9c8] sm:$0xff]
    %v747 = vld [vmem:[#allocation2 + $0x9d0] sm:$0xff]
    %v748 = vld [vmem:[#allocation2 + $0x9d8] sm:$0xff]
    %v749 = vld [vmem:[#allocation2 + $0x9e0] sm:$0xff]
    %v750 = vld [vmem:[#allocation2 + $0x9e8] sm:$0xff]
    %v751 = vld [vmem:[#allocation2 + $0x9f0] sm:$0xff]
    %v752 = vld [vmem:[#allocation2 + $0x9f8] sm:$0xff]
    %v753 = vld [vmem:[#allocation2 + $0xa00] sm:$0xff]
    %v754 = vld [vmem:[#allocation2 + $0xa08] sm:$0xff]
    %v755 = vld [vmem:[#allocation2 + $0xa10] sm:$0xff]
    %v756 = vld [vmem:[#allocation2 + $0xa18] sm:$0xff]
    %v757 = vld [vmem:[#allocation2 + $0xa20] sm:$0xff]
    %v758 = vld [vmem:[#allocation2 + $0xa28] sm:$0xff]
    %v759 = vld [vmem:[#allocation2 + $0xa30] sm:$0xff]
    %v760 = vld [vmem:[#allocation2 + $0xa38] sm:$0xff]
    %v761 = vld [vmem:[#allocation2 + $0xa40] sm:$0xff]
    %v762 = vld [vmem:[#allocation2 + $0xa48] sm:$0xff]
    %v763 = vld [vmem:[#allocation2 + $0xa50] sm:$0xff]
    %v764 = vld [vmem:[#allocation2 + $0xa58] sm:$0xff]
    %v765 = vld [vmem:[#allocation2 + $0xa60] sm:$0xff]
    %v766 = vld [vmem:[#allocation2 + $0xa68] sm:$0xff]
    %v767 = vld [vmem:[#allocation2 + $0xa70] sm:$0xff]
    %v768 = vld [vmem:[#allocation2 + $0xa78] sm:$0xff]
    %v769 = vld [vmem:[#allocation2 + $0xa80] sm:$0xff]
    %v770 = vld [vmem:[#allocation2 + $0xa88] sm:$0xff]
    %v771 = vld [vmem:[#allocation2 + $0xa90] sm:$0xff]
    %v772 = vld [vmem:[#allocation2 + $0xa98] sm:$0xff]
    %v773 = vld [vmem:[#allocation2 + $0xaa0] sm:$0xff]
    %v774 = vld [vmem:[#allocation2 + $0xaa8] sm:$0xff]
    %v775 = vld [vmem:[#allocation2 + $0xab0] sm:$0xff]
    %v776 = vld [vmem:[#allocation2 + $0xab8] sm:$0xff]
    %v777 = vld [vmem:[#allocation2 + $0xac0] sm:$0xff]
    %v778 = vld [vmem:[#allocation2 + $0xac8] sm:$0xff]
    %v779 = vld [vmem:[#allocation2 + $0xad0] sm:$0xff]
    %v780 = vld [vmem:[#allocation2 + $0xad8] sm:$0xff]
    %v781 = vld [vmem:[#allocation2 + $0xae0] sm:$0xff]
    %v782 = vld [vmem:[#allocation2 + $0xae8] sm:$0xff]
    %v783 = vld [vmem:[#allocation2 + $0xaf0] sm:$0xff]
    %v784 = vld [vmem:[#allocation2 + $0xaf8] sm:$0xff]
    %v785 = vld [vmem:[#allocation2 + $0xb00] sm:$0xff]
    %v786 = vld [vmem:[#allocation2 + $0xb08] sm:$0xff]
    %v787 = vld [vmem:[#allocation2 + $0xb10] sm:$0xff]
    %v788 = vld [vmem:[#allocation2 + $0xb18] sm:$0xff]
    %v789 = vld [vmem:[#allocation2 + $0xb20] sm:$0xff]
    %v790 = vld [vmem:[#allocation2 + $0xb28] sm:$0xff]
    %v791 = vld [vmem:[#allocation2 + $0xb30] sm:$0xff]
    %v792 = vld [vmem:[#allocation2 + $0xb38] sm:$0xff]
    %v793 = vld [vmem:[#allocation2 + $0xb40] sm:$0xff]
    %v794 = vld [vmem:[#allocation2 + $0xb48] sm:$0xff]
    %v795 = vld [vmem:[#allocation2 + $0xb50] sm:$0xff]
    %v796 = vld [vmem:[#allocation2 + $0xb58] sm:$0xff]
    %v797 = vld [vmem:[#allocation2 + $0xb60] sm:$0xff]
    %v798 = vld [vmem:[#allocation2 + $0xb68] sm:$0xff]
    %v799 = vld [vmem:[#allocation2 + $0xb70] sm:$0xff]
    %v800 = vld [vmem:[#allocation2 + $0xb78] sm:$0xff]
    %v801 = vld [vmem:[#allocation2 + $0xb80] sm:$0xff]
    %v802 = vld [vmem:[#allocation2 + $0xb88] sm:$0xff]
    %v803 = vld [vmem:[#allocation2 + $0xb90] sm:$0xff]
    %v804 = vld [vmem:[#allocation2 + $0xb98] sm:$0xff]
    %v805 = vld [vmem:[#allocation2 + $0xba0] sm:$0xff]
    %v806 = vld [vmem:[#allocation2 + $0xba8] sm:$0xff]
    %v807 = vld [vmem:[#allocation2 + $0xbb0] sm:$0xff]
    %v808 = vld [vmem:[#allocation2 + $0xbb8] sm:$0xff]
    %v809 = vld [vmem:[#allocation2 + $0xbc0] sm:$0xff]
    %v810 = vld [vmem:[#allocation2 + $0xbc8] sm:$0xff]
    %v811 = vld [vmem:[#allocation2 + $0xbd0] sm:$0xff]
    %v812 = vld [vmem:[#allocation2 + $0xbd8] sm:$0xff]
    %v813 = vld [vmem:[#allocation2 + $0xbe0] sm:$0xff]
    %v814 = vld [vmem:[#allocation2 + $0xbe8] sm:$0xff]
    %v815 = vld [vmem:[#allocation2 + $0xbf0] sm:$0xff]
    %v816 = vld [vmem:[#allocation2 + $0xbf8] sm:$0xff]
    %817 = vmatprep.subr.mxu0 %v754
    %818 = vmatpush1.msra.mxu0 %v753
    %819 = vmatprep.subr.mxu0 %v756
    %820 = vmatpush1.msra.mxu0 %v755
    %821 = vmatprep.subr.mxu0 %v758
    %822 = vmatpush1.msra.mxu0 %v757
    %823 = vmatprep.subr.mxu0 %v760
    %824 = vmatpush1.msra.mxu0 %v759
    %825 = vmatprep.subr.mxu0 %v762
    %826 = vmatpush1.msra.mxu0 %v761
    %827 = vmatprep.subr.mxu0 %v764
    %828 = vmatpush1.msra.mxu0 %v763
    %829 = vmatprep.subr.mxu0 %v766
    %830 = vmatpush1.msra.mxu0 %v765
    %831 = vmatprep.subr.mxu0 %v768
    %832 = vmatpush1.msra.mxu0 %v767
    %833 = vmatprep.subr.mxu0 %v770
    %834 = vmatpush1.msra.mxu0 %v769
    %835 = vmatprep.subr.mxu0 %v772
    %836 = vmatpush1.msra.mxu0 %v771
    %837 = vmatprep.subr.mxu0 %v774
    %838 = vmatpush1.msra.mxu0 %v773
    %839 = vmatprep.subr.mxu0 %v776
    %840 = vmatpush1.msra.mxu0 %v775
    %841 = vmatprep.subr.mxu0 %v778
    %842 = vmatpush1.msra.mxu0 %v777
    %843 = vmatprep.subr.mxu0 %v780
    %844 = vmatpush1.msra.mxu0 %v779
    %845 = vmatprep.subr.mxu0 %v782
    %846 = vmatpush1.msra.mxu0 %v781
    %847 = vmatprep.subr.mxu0 %v784
    %848 = vmatpush1.msra.mxu0 %v783
    %849 = vmatprep.subr.mxu0 %v786
    %850 = vmatpush1.msra.mxu0 %v785
    %851 = vmatprep.subr.mxu0 %v788
    %852 = vmatpush1.msra.mxu0 %v787
    %853 = vmatprep.subr.mxu0 %v790
    %854 = vmatpush1.msra.mxu0 %v789
    %855 = vmatprep.subr.mxu0 %v792
    %856 = vmatpush1.msra.mxu0 %v791
    %857 = vmatprep.subr.mxu0 %v794
    %858 = vmatpush1.msra.mxu0 %v793
    %859 = vmatprep.subr.mxu0 %v796
    %860 = vmatpush1.msra.mxu0 %v795
    %861 = vmatprep.subr.mxu0 %v798
    %862 = vmatpush1.msra.mxu0 %v797
    %863 = vmatprep.subr.mxu0 %v800
    %864 = vmatpush1.msra.mxu0 %v799
    %865 = vmatprep.subr.mxu0 %v802
    %866 = vmatpush1.msra.mxu0 %v801
    %867 = vmatprep.subr.mxu0 %v804
    %868 = vmatpush1.msra.mxu0 %v803
    %869 = vmatprep.subr.mxu0 %v806
    %870 = vmatpush1.msra.mxu0 %v805
    %871 = vmatprep.subr.mxu0 %v808
    %872 = vmatpush1.msra.mxu0 %v807
    %873 = vmatprep.subr.mxu0 %v810
    %874 = vmatpush1.msra.mxu0 %v809
    %875 = vmatprep.subr.mxu0 %v812
    %876 = vmatpush1.msra.mxu0 %v811
    %877 = vmatprep.subr.mxu0 %v814
    %878 = vmatpush1.msra.mxu0 %v813
    %879 = vmatprep.subr.mxu0 %v816
    %880 = vmatpush1.msra.mxu0 %v815
    %881 = vmatprep.mubr.f32.mxu0 %v688
    %882 = vmatmul.mubr.f32.gmra.mrb[0].mxu0 %v687
    %v883 = vpop.f32.mrb[0].mxu0
    %v884 = vadd.f32 0.0, %v883
    %v885 = vpop.f32.mrb[0].mxu0
    %v886 = vadd.f32 0.0, %v885
    %887 = vdwg.mxu0
    %888 = vmatprep.subr.mxu0 %v690
    %889 = vmatpush1.msra.mxu0 %v689
    %890 = vmatprep.subr.mxu0 %v692
    %891 = vmatpush1.msra.mxu0 %v691
    %892 = vmatprep.subr.mxu0 %v694
    %893 = vmatpush1.msra.mxu0 %v693
    %894 = vmatprep.subr.mxu0 %v696
    %895 = vmatpush1.msra.mxu0 %v695
    %896 = vmatprep.subr.mxu0 %v698
    %897 = vmatpush1.msra.mxu0 %v697
    %898 = vmatprep.subr.mxu0 %v700
    %899 = vmatpush1.msra.mxu0 %v699
    %900 = vmatprep.subr.mxu0 %v702
    %901 = vmatpush1.msra.mxu0 %v701
    %902 = vmatprep.subr.mxu0 %v704
    %903 = vmatpush1.msra.mxu0 %v703
    %904 = vmatprep.subr.mxu0 %v706
    %905 = vmatpush1.msra.mxu0 %v705
    %906 = vmatprep.subr.mxu0 %v708
    %907 = vmatpush1.msra.mxu0 %v707
    %908 = vmatprep.subr.mxu0 %v710
    %909 = vmatpush1.msra.mxu0 %v709
    %910 = vmatprep.subr.mxu0 %v712
    %911 = vmatpush1.msra.mxu0 %v711
    %912 = vmatprep.subr.mxu0 %v714
    %913 = vmatpush1.msra.mxu0 %v713
    %914 = vmatprep.subr.mxu0 %v716
    %915 = vmatpush1.msra.mxu0 %v715
    %916 = vmatprep.subr.mxu0 %v718
    %917 = vmatpush1.msra.mxu0 %v717
    %918 = vmatprep.subr.mxu0 %v720
    %919 = vmatpush1.msra.mxu0 %v719
    %920 = vmatprep.subr.mxu0 %v722
    %921 = vmatpush1.msra.mxu0 %v721
    %922 = vmatprep.subr.mxu0 %v724
    %923 = vmatpush1.msra.mxu0 %v723
    %924 = vmatprep.subr.mxu0 %v726
    %925 = vmatpush1.msra.mxu0 %v725
    %926 = vmatprep.subr.mxu0 %v728
    %927 = vmatpush1.msra.mxu0 %v727
    %928 = vmatprep.subr.mxu0 %v730
    %929 = vmatpush1.msra.mxu0 %v729
    %930 = vmatprep.subr.mxu0 %v732
    %931 = vmatpush1.msra.mxu0 %v731
    %932 = vmatprep.subr.mxu0 %v734
    %933 = vmatpush1.msra.mxu0 %v733
    %934 = vmatprep.subr.mxu0 %v736
    %935 = vmatpush1.msra.mxu0 %v735
    %936 = vmatprep.subr.mxu0 %v738
    %937 = vmatpush1.msra.mxu0 %v737
    %938 = vmatprep.subr.mxu0 %v740
    %939 = vmatpush1.msra.mxu0 %v739
    %940 = vmatprep.subr.mxu0 %v742
    %941 = vmatpush1.msra.mxu0 %v741
    %942 = vmatprep.subr.mxu0 %v744
    %943 = vmatpush1.msra.mxu0 %v743
    %944 = vmatprep.subr.mxu0 %v746
    %945 = vmatpush1.msra.mxu0 %v745
    %946 = vmatprep.subr.mxu0 %v748
    %947 = vmatpush1.msra.mxu0 %v747
    %948 = vmatprep.subr.mxu0 %v750
    %949 = vmatpush1.msra.mxu0 %v749
    %950 = vmatprep.subr.mxu0 %v752
    %951 = vmatpush1.msra.mxu0 %v751
    %952 = vmatprep.mubr.f32.mxu0 %v686
    %953 = vmatmul.mubr.f32.gmra.mrb[0].mxu0 %v685
    %v954 = vpop.f32.mrb[0].mxu0
    %v955 = vadd.f32 %v884, %v954
    %v956 = vpop.f32.mrb[0].mxu0
    %v957 = vadd.f32 %v886, %v956
    %958 = vdwg.mxu0
    %s959 = scalar_lea.vmem [#allocation2], 4100
    %v960 = vld [vmem:[%s959] ss:$8 sm:$0x3]
    %v962 = vlaneseq
    %v963 = vshrl.u32 %v962, 7
    %v964 = vsub.s32 0, %v963
    %v965 = vrot.slane %v960, %v964
    %v966 = vlaneseq
    %v967 = vshrl.u32 %v966, 7
    %v968 = vsub.s32 1, %v967
    %v969 = vrot.slane %v960, %v968
    %v972 = vadd.f32 %v955, %v965
    %v973 = vadd.f32 %v957, %v969
    %v974 = vmax.f32 %v972, 0.0
    %v975 = vmax.f32 %v973, 0.0
    %v976 = vld [vmem:[#allocation2 + $0xc00] sm:$0xff]
    %v977 = vld [vmem:[#allocation2 + $0xc08] sm:$0xff]
    %v978 = vld [vmem:[#allocation2 + $0xc10] sm:$0xff]
    %v979 = vld [vmem:[#allocation2 + $0xc18] sm:$0xff]
    %v980 = vld [vmem:[#allocation2 + $0xc20] sm:$0xff]
    %v981 = vld [vmem:[#allocation2 + $0xc28] sm:$0xff]
    %v982 = vld [vmem:[#allocation2 + $0xc30] sm:$0xff]
    %v983 = vld [vmem:[#allocation2 + $0xc38] sm:$0xff]
    %v984 = vld [vmem:[#allocation2 + $0xc40] sm:$0xff]
    %v985 = vld [vmem:[#allocation2 + $0xc48] sm:$0xff]
    %v986 = vld [vmem:[#allocation2 + $0xc50] sm:$0xff]
    %v987 = vld [vmem:[#allocation2 + $0xc58] sm:$0xff]
    %v988 = vld [vmem:[#allocation2 + $0xc60] sm:$0xff]
    %v989 = vld [vmem:[#allocation2 + $0xc68] sm:$0xff]
    %v990 = vld [vmem:[#allocation2 + $0xc70] sm:$0xff]
    %v991 = vld [vmem:[#allocation2 + $0xc78] sm:$0xff]
    %v992 = vld [vmem:[#allocation2 + $0xc80] sm:$0xff]
    %v993 = vld [vmem:[#allocation2 + $0xc88] sm:$0xff]
    %v994 = vld [vmem:[#allocation2 + $0xc90] sm:$0xff]
    %v995 = vld [vmem:[#allocation2 + $0xc98] sm:$0xff]
    %v996 = vld [vmem:[#allocation2 + $0xca0] sm:$0xff]
    %v997 = vld [vmem:[#allocation2 + $0xca8] sm:$0xff]
    %v998 = vld [vmem:[#allocation2 + $0xcb0] sm:$0xff]
    %v999 = vld [vmem:[#allocation2 + $0xcb8] sm:$0xff]
    %v1000 = vld [vmem:[#allocation2 + $0xcc0] sm:$0xff]
    %v1001 = vld [vmem:[#allocation2 + $0xcc8] sm:$0xff]
    %v1002 = vld [vmem:[#allocation2 + $0xcd0] sm:$0xff]
    %v1003 = vld [vmem:[#allocation2 + $0xcd8] sm:$0xff]
    %v1004 = vld [vmem:[#allocation2 + $0xce0] sm:$0xff]
    %v1005 = vld [vmem:[#allocation2 + $0xce8] sm:$0xff]
    %v1006 = vld [vmem:[#allocation2 + $0xcf0] sm:$0xff]
    %v1007 = vld [vmem:[#allocation2 + $0xcf8] sm:$0xff]
    %v1008 = vld [vmem:[#allocation2 + $0xd00] sm:$0xff]
    %v1009 = vld [vmem:[#allocation2 + $0xd08] sm:$0xff]
    %v1010 = vld [vmem:[#allocation2 + $0xd10] sm:$0xff]
    %v1011 = vld [vmem:[#allocation2 + $0xd18] sm:$0xff]
    %v1012 = vld [vmem:[#allocation2 + $0xd20] sm:$0xff]
    %v1013 = vld [vmem:[#allocation2 + $0xd28] sm:$0xff]
    %v1014 = vld [vmem:[#allocation2 + $0xd30] sm:$0xff]
    %v1015 = vld [vmem:[#allocation2 + $0xd38] sm:$0xff]
    %v1016 = vld [vmem:[#allocation2 + $0xd40] sm:$0xff]
    %v1017 = vld [vmem:[#allocation2 + $0xd48] sm:$0xff]
    %v1018 = vld [vmem:[#allocation2 + $0xd50] sm:$0xff]
    %v1019 = vld [vmem:[#allocation2 + $0xd58] sm:$0xff]
    %v1020 = vld [vmem:[#allocation2 + $0xd60] sm:$0xff]
    %v1021 = vld [vmem:[#allocation2 + $0xd68] sm:$0xff]
    %v1022 = vld [vmem:[#allocation2 + $0xd70] sm:$0xff]
    %v1023 = vld [vmem:[#allocation2 + $0xd78] sm:$0xff]
    %v1024 = vld [vmem:[#allocation2 + $0xd80] sm:$0xff]
    %v1025 = vld [vmem:[#allocation2 + $0xd88] sm:$0xff]
    %v1026 = vld [vmem:[#allocation2 + $0xd90] sm:$0xff]
    %v1027 = vld [vmem:[#allocation2 + $0xd98] sm:$0xff]
    %v1028 = vld [vmem:[#allocation2 + $0xda0] sm:$0xff]
    %v1029 = vld [vmem:[#allocation2 + $0xda8] sm:$0xff]
    %v1030 = vld [vmem:[#allocation2 + $0xdb0] sm:$0xff]
    %v1031 = vld [vmem:[#allocation2 + $0xdb8] sm:$0xff]
    %v1032 = vld [vmem:[#allocation2 + $0xdc0] sm:$0xff]
    %v1033 = vld [vmem:[#allocation2 + $0xdc8] sm:$0xff]
    %v1034 = vld [vmem:[#allocation2 + $0xdd0] sm:$0xff]
    %v1035 = vld [vmem:[#allocation2 + $0xdd8] sm:$0xff]
    %v1036 = vld [vmem:[#allocation2 + $0xde0] sm:$0xff]
    %v1037 = vld [vmem:[#allocation2 + $0xde8] sm:$0xff]
    %v1038 = vld [vmem:[#allocation2 + $0xdf0] sm:$0xff]
    %v1039 = vld [vmem:[#allocation2 + $0xdf8] sm:$0xff]
    %s1040 = scalar_lea.vmem [#allocation2], 4101
    %v1041 = vld [vmem:[%s1040] ss:$8 sm:$0x3]
    %v1043 = vlaneseq
    %v1044 = vshrl.u32 %v1043, 7
    %v1045 = vsub.s32 0, %v1044
    %v1046 = vrot.slane %v1041, %v1045
    %v1047 = vlaneseq
    %v1048 = vshrl.u32 %v1047, 7
    %v1049 = vsub.s32 1, %v1048
    %v1050 = vrot.slane %v1041, %v1049
    %1053 = vmatprep.subr.mxu0 %v977
    %1054 = vmatpush1.msra.mxu0 %v976
    %1055 = vmatprep.subr.mxu0 %v979
    %1056 = vmatpush1.msra.mxu0 %v978
    %1057 = vmatprep.subr.mxu0 %v981
    %1058 = vmatpush1.msra.mxu0 %v980
    %1059 = vmatprep.subr.mxu0 %v983
    %1060 = vmatpush1.msra.mxu0 %v982
    %1061 = vmatprep.subr.mxu0 %v985
    %1062 = vmatpush1.msra.mxu0 %v984
    %1063 = vmatprep.subr.mxu0 %v987
    %1064 = vmatpush1.msra.mxu0 %v986
    %1065 = vmatprep.subr.mxu0 %v989
    %1066 = vmatpush1.msra.mxu0 %v988
    %1067 = vmatprep.subr.mxu0 %v991
    %1068 = vmatpush1.msra.mxu0 %v990
    %1069 = vmatprep.subr.mxu0 %v993
    %1070 = vmatpush1.msra.mxu0 %v992
    %1071 = vmatprep.subr.mxu0 %v995
    %1072 = vmatpush1.msra.mxu0 %v994
    %1073 = vmatprep.subr.mxu0 %v997
    %1074 = vmatpush1.msra.mxu0 %v996
    %1075 = vmatprep.subr.mxu0 %v999
    %1076 = vmatpush1.msra.mxu0 %v998
    %1077 = vmatprep.subr.mxu0 %v1001
    %1078 = vmatpush1.msra.mxu0 %v1000
    %1079 = vmatprep.subr.mxu0 %v1003
    %1080 = vmatpush1.msra.mxu0 %v1002
    %1081 = vmatprep.subr.mxu0 %v1005
    %1082 = vmatpush1.msra.mxu0 %v1004
    %1083 = vmatprep.subr.mxu0 %v1007
    %1084 = vmatpush1.msra.mxu0 %v1006
    %1085 = vmatprep.subr.mxu0 %v1009
    %1086 = vmatpush1.msra.mxu0 %v1008
    %1087 = vmatprep.subr.mxu0 %v1011
    %1088 = vmatpush1.msra.mxu0 %v1010
    %1089 = vmatprep.subr.mxu0 %v1013
    %1090 = vmatpush1.msra.mxu0 %v1012
    %1091 = vmatprep.subr.mxu0 %v1015
    %1092 = vmatpush1.msra.mxu0 %v1014
    %1093 = vmatprep.subr.mxu0 %v1017
    %1094 = vmatpush1.msra.mxu0 %v1016
    %1095 = vmatprep.subr.mxu0 %v1019
    %1096 = vmatpush1.msra.mxu0 %v1018
    %1097 = vmatprep.subr.mxu0 %v1021
    %1098 = vmatpush1.msra.mxu0 %v1020
    %1099 = vmatprep.subr.mxu0 %v1023
    %1100 = vmatpush1.msra.mxu0 %v1022
    %1101 = vmatprep.subr.mxu0 %v1025
    %1102 = vmatpush1.msra.mxu0 %v1024
    %1103 = vmatprep.subr.mxu0 %v1027
    %1104 = vmatpush1.msra.mxu0 %v1026
    %1105 = vmatprep.subr.mxu0 %v1029
    %1106 = vmatpush1.msra.mxu0 %v1028
    %1107 = vmatprep.subr.mxu0 %v1031
    %1108 = vmatpush1.msra.mxu0 %v1030
    %1109 = vmatprep.subr.mxu0 %v1033
    %1110 = vmatpush1.msra.mxu0 %v1032
    %1111 = vmatprep.subr.mxu0 %v1035
    %1112 = vmatpush1.msra.mxu0 %v1034
    %1113 = vmatprep.subr.mxu0 %v1037
    %1114 = vmatpush1.msra.mxu0 %v1036
    %1115 = vmatprep.subr.mxu0 %v1039
    %1116 = vmatpush1.msra.mxu0 %v1038
    %1117 = vmatprep.mubr.f32.mxu0 %v975
    %1118 = vmatmul.mubr.f32.gmra.mrb[0].mxu0 %v974
    %v1119 = vpop.f32.mrb[0].mxu0
    %v1120 = vadd.f32 %v1046, %v1119
    %v1121 = vpop.f32.mrb[0].mxu0
    %v1122 = vadd.f32 %v1050, %v1121
    %1123 = vdwg.mxu0
    %v1124 = vmax.f32 %v1120, 0.0
    %v1125 = vmax.f32 %v1122, 0.0
    %v1126 = vld [vmem:[#allocation2 + $0xe00] sm:$0xff]
    %v1127 = vld [vmem:[#allocation2 + $0xe08] sm:$0xff]
    %v1128 = vld [vmem:[#allocation2 + $0xe10] sm:$0xff]
    %v1129 = vld [vmem:[#allocation2 + $0xe18] sm:$0xff]
    %v1130 = vld [vmem:[#allocation2 + $0xe20] sm:$0xff]
    %v1131 = vld [vmem:[#allocation2 + $0xe28] sm:$0xff]
    %v1132 = vld [vmem:[#allocation2 + $0xe30] sm:$0xff]
    %v1133 = vld [vmem:[#allocation2 + $0xe38] sm:$0xff]
    %v1134 = vld [vmem:[#allocation2 + $0xe40] sm:$0xff]
    %v1135 = vld [vmem:[#allocation2 + $0xe48] sm:$0xff]
    %v1136 = vld [vmem:[#allocation2 + $0xe50] sm:$0xff]
    %v1137 = vld [vmem:[#allocation2 + $0xe58] sm:$0xff]
    %v1138 = vld [vmem:[#allocation2 + $0xe60] sm:$0xff]
    %v1139 = vld [vmem:[#allocation2 + $0xe68] sm:$0xff]
    %v1140 = vld [vmem:[#allocation2 + $0xe70] sm:$0xff]
    %v1141 = vld [vmem:[#allocation2 + $0xe78] sm:$0xff]
    %v1142 = vld [vmem:[#allocation2 + $0xe80] sm:$0xff]
    %v1143 = vld [vmem:[#allocation2 + $0xe88] sm:$0xff]
    %v1144 = vld [vmem:[#allocation2 + $0xe90] sm:$0xff]
    %v1145 = vld [vmem:[#allocation2 + $0xe98] sm:$0xff]
    %v1146 = vld [vmem:[#allocation2 + $0xea0] sm:$0xff]
    %v1147 = vld [vmem:[#allocation2 + $0xea8] sm:$0xff]
    %v1148 = vld [vmem:[#allocation2 + $0xeb0] sm:$0xff]
    %v1149 = vld [vmem:[#allocation2 + $0xeb8] sm:$0xff]
    %v1150 = vld [vmem:[#allocation2 + $0xec0] sm:$0xff]
    %v1151 = vld [vmem:[#allocation2 + $0xec8] sm:$0xff]
    %v1152 = vld [vmem:[#allocation2 + $0xed0] sm:$0xff]
    %v1153 = vld [vmem:[#allocation2 + $0xed8] sm:$0xff]
    %v1154 = vld [vmem:[#allocation2 + $0xee0] sm:$0xff]
    %v1155 = vld [vmem:[#allocation2 + $0xee8] sm:$0xff]
    %v1156 = vld [vmem:[#allocation2 + $0xef0] sm:$0xff]
    %v1157 = vld [vmem:[#allocation2 + $0xef8] sm:$0xff]
    %v1158 = vld [vmem:[#allocation2 + $0xf00] sm:$0xff]
    %v1159 = vld [vmem:[#allocation2 + $0xf08] sm:$0xff]
    %v1160 = vld [vmem:[#allocation2 + $0xf10] sm:$0xff]
    %v1161 = vld [vmem:[#allocation2 + $0xf18] sm:$0xff]
    %v1162 = vld [vmem:[#allocation2 + $0xf20] sm:$0xff]
    %v1163 = vld [vmem:[#allocation2 + $0xf28] sm:$0xff]
    %v1164 = vld [vmem:[#allocation2 + $0xf30] sm:$0xff]
    %v1165 = vld [vmem:[#allocation2 + $0xf38] sm:$0xff]
    %v1166 = vld [vmem:[#allocation2 + $0xf40] sm:$0xff]
    %v1167 = vld [vmem:[#allocation2 + $0xf48] sm:$0xff]
    %v1168 = vld [vmem:[#allocation2 + $0xf50] sm:$0xff]
    %v1169 = vld [vmem:[#allocation2 + $0xf58] sm:$0xff]
    %v1170 = vld [vmem:[#allocation2 + $0xf60] sm:$0xff]
    %v1171 = vld [vmem:[#allocation2 + $0xf68] sm:$0xff]
    %v1172 = vld [vmem:[#allocation2 + $0xf70] sm:$0xff]
    %v1173 = vld [vmem:[#allocation2 + $0xf78] sm:$0xff]
    %v1174 = vld [vmem:[#allocation2 + $0xf80] sm:$0xff]
    %v1175 = vld [vmem:[#allocation2 + $0xf88] sm:$0xff]
    %v1176 = vld [vmem:[#allocation2 + $0xf90] sm:$0xff]
    %v1177 = vld [vmem:[#allocation2 + $0xf98] sm:$0xff]
    %v1178 = vld [vmem:[#allocation2 + $0xfa0] sm:$0xff]
    %v1179 = vld [vmem:[#allocation2 + $0xfa8] sm:$0xff]
    %v1180 = vld [vmem:[#allocation2 + $0xfb0] sm:$0xff]
    %v1181 = vld [vmem:[#allocation2 + $0xfb8] sm:$0xff]
    %v1182 = vld [vmem:[#allocation2 + $0xfc0] sm:$0xff]
    %v1183 = vld [vmem:[#allocation2 + $0xfc8] sm:$0xff]
    %v1184 = vld [vmem:[#allocation2 + $0xfd0] sm:$0xff]
    %v1185 = vld [vmem:[#allocation2 + $0xfd8] sm:$0xff]
    %v1186 = vld [vmem:[#allocation2 + $0xfe0] sm:$0xff]
    %v1187 = vld [vmem:[#allocation2 + $0xfe8] sm:$0xff]
    %v1188 = vld [vmem:[#allocation2 + $0xff0] sm:$0xff]
    %v1189 = vld [vmem:[#allocation2 + $0xff8] sm:$0xff]
    %s1190 = scalar_lea.vmem [#allocation2], 4102
    %v1191 = vld [vmem:[%s1190] ss:$8 sm:$0x3]
    %v1193 = vlaneseq
    %v1194 = vshrl.u32 %v1193, 7
    %v1195 = vsub.s32 0, %v1194
    %v1196 = vrot.slane %v1191, %v1195
    %v1197 = vlaneseq
    %v1198 = vshrl.u32 %v1197, 7
    %v1199 = vsub.s32 1, %v1198
    %v1200 = vrot.slane %v1191, %v1199
    %1203 = vmatprep.subr.mxu0 %v1127
    %1204 = vmatpush1.msra.mxu0 %v1126
    %1205 = vmatprep.subr.mxu0 %v1129
    %1206 = vmatpush1.msra.mxu0 %v1128
    %1207 = vmatprep.subr.mxu0 %v1131
    %1208 = vmatpush1.msra.mxu0 %v1130
    %1209 = vmatprep.subr.mxu0 %v1133
    %1210 = vmatpush1.msra.mxu0 %v1132
    %1211 = vmatprep.subr.mxu0 %v1135
    %1212 = vmatpush1.msra.mxu0 %v1134
    %1213 = vmatprep.subr.mxu0 %v1137
    %1214 = vmatpush1.msra.mxu0 %v1136
    %1215 = vmatprep.subr.mxu0 %v1139
    %1216 = vmatpush1.msra.mxu0 %v1138
    %1217 = vmatprep.subr.mxu0 %v1141
    %1218 = vmatpush1.msra.mxu0 %v1140
    %1219 = vmatprep.subr.mxu0 %v1143
    %1220 = vmatpush1.msra.mxu0 %v1142
    %1221 = vmatprep.subr.mxu0 %v1145
    %1222 = vmatpush1.msra.mxu0 %v1144
    %1223 = vmatprep.subr.mxu0 %v1147
    %1224 = vmatpush1.msra.mxu0 %v1146
    %1225 = vmatprep.subr.mxu0 %v1149
    %1226 = vmatpush1.msra.mxu0 %v1148
    %1227 = vmatprep.subr.mxu0 %v1151
    %1228 = vmatpush1.msra.mxu0 %v1150
    %1229 = vmatprep.subr.mxu0 %v1153
    %1230 = vmatpush1.msra.mxu0 %v1152
    %1231 = vmatprep.subr.mxu0 %v1155
    %1232 = vmatpush1.msra.mxu0 %v1154
    %1233 = vmatprep.subr.mxu0 %v1157
    %1234 = vmatpush1.msra.mxu0 %v1156
    %1235 = vmatprep.subr.mxu0 %v1159
    %1236 = vmatpush1.msra.mxu0 %v1158
    %1237 = vmatprep.subr.mxu0 %v1161
    %1238 = vmatpush1.msra.mxu0 %v1160
    %1239 = vmatprep.subr.mxu0 %v1163
    %1240 = vmatpush1.msra.mxu0 %v1162
    %1241 = vmatprep.subr.mxu0 %v1165
    %1242 = vmatpush1.msra.mxu0 %v1164
    %1243 = vmatprep.subr.mxu0 %v1167
    %1244 = vmatpush1.msra.mxu0 %v1166
    %1245 = vmatprep.subr.mxu0 %v1169
    %1246 = vmatpush1.msra.mxu0 %v1168
    %1247 = vmatprep.subr.mxu0 %v1171
    %1248 = vmatpush1.msra.mxu0 %v1170
    %1249 = vmatprep.subr.mxu0 %v1173
    %1250 = vmatpush1.msra.mxu0 %v1172
    %1251 = vmatprep.subr.mxu0 %v1175
    %1252 = vmatpush1.msra.mxu0 %v1174
    %1253 = vmatprep.subr.mxu0 %v1177
    %1254 = vmatpush1.msra.mxu0 %v1176
    %1255 = vmatprep.subr.mxu0 %v1179
    %1256 = vmatpush1.msra.mxu0 %v1178
    %1257 = vmatprep.subr.mxu0 %v1181
    %1258 = vmatpush1.msra.mxu0 %v1180
    %1259 = vmatprep.subr.mxu0 %v1183
    %1260 = vmatpush1.msra.mxu0 %v1182
    %1261 = vmatprep.subr.mxu0 %v1185
    %1262 = vmatpush1.msra.mxu0 %v1184
    %1263 = vmatprep.subr.mxu0 %v1187
    %1264 = vmatpush1.msra.mxu0 %v1186
    %1265 = vmatprep.subr.mxu0 %v1189
    %1266 = vmatpush1.msra.mxu0 %v1188
    %1267 = vmatprep.mubr.f32.mxu0 %v1125
    %1268 = vmatmul.mubr.f32.gmra.mrb[0].mxu0 %v1124
    %v1269 = vpop.f32.mrb[0].mxu0
    %v1270 = vadd.f32 %v1196, %v1269
    %v1271 = vpop.f32.mrb[0].mxu0
    %v1272 = vadd.f32 %v1200, %v1271
    %1273 = vdwg.mxu0
    %1274 = vst [vmem:[%s2] sm:$0xff] %v685
    %1275 = vst [vmem:[%s2 + $0x8] sm:$0xff] %v686
    %1276 = vst [vmem:[%s2 + $0x10] sm:$0xff] %v687
    %1277 = vst [vmem:[%s2 + $0x18] sm:$0xff] %v688
    %1278 = vst [vmem:[%s2 + $0x20] sm:$0xff] %v1270
    %1279 = vst [vmem:[%s2 + $0x28] sm:$0xff] %v1272
    // Predicated region
    $region14: #{mlp_ws_al_bd_forward.1} parent=1 // pred_check
      _
    $region15: #{mlp_ws_al_bd_forward.1} parent=1 // pred_check_branch
      %1281 = sbr.rel (0) target = $region17
    $region16: #{mlp_ws_al_bd_forward.1} parent=1 // pred_region
      _
    $region17: #{mlp_ws_al_bd_forward.1} parent=1 // pred_fallthru
      _
    // Predicated region
    $region18: #{mlp_ws_al_bd_forward.1} parent=1 // pred_check
      _
    $region19: #{mlp_ws_al_bd_forward.1} parent=1 // pred_check_branch
      %1283 = sbr.rel (0) target = $region21
    $region20: #{mlp_ws_al_bd_forward.1} parent=1 // pred_region
      _
    $region21: #{mlp_ws_al_bd_forward.1} parent=1 // pred_fallthru
      _
    %1284 = vsyncpa [#allocation3], 1

</llo_original>
